<compile_context>
chip_gen: v7x
topology: tpu7x:2x2x1
jax: 0.10.0
libtpu: 0.0.40
codegen_flags: <defaults>
</compile_context>

<pallas_src>
import functools

import jax
import jax.numpy as jnp
from jax import lax
from jax.experimental import pallas as pl
from jax.experimental.pallas import tpu as pltpu


# ----------------------------- Pallas kernel ------------------------------ #

def _layer_norm(x, gamma, beta, eps=1e-5):
    mu = jnp.mean(x, axis=-1, keepdims=True)
    var = jnp.mean((x - mu) ** 2, axis=-1, keepdims=True)
    return (x - mu) * lax.rsqrt(var + eps) * gamma + beta


def fused_encoder_kernel(
    x_ref, bias_ref,
    wqkv_ref, bqkv_ref, wo_ref, bo_ref,
    ln1g_ref, ln1b_ref,
    w1_ref, b1_ref, w2_ref, b2_ref,
    ln2g_ref, ln2b_ref,
    o_ref,
    h_ref,                       # VMEM scratch: resident (S, D) activation
    *, num_heads, head_dim,
):
    layer = pl.program_id(1)
    last_layer = pl.num_programs(1) - 1

    # Layer 0 of each batch item: pull the embedded input into the resident
    # VMEM activation buffer.  It stays in VMEM across all layers.
    @pl.when(layer == 0)
    def _():
        h_ref[...] = x_ref[0]

    x = h_ref[...]                                   # (S, D) f32
    S, D = x.shape

    # Additive key-padding bias: (1, S) f32, already -1e9 at PAD key columns.
    # Broadcasts over query rows when added to the (S, S) scores.
    bias = bias_ref[0]

    # --- multi-head self-attention (bf16 MXU inputs, f32 accumulation) ---
    xb = x.astype(jnp.bfloat16)
    qkv = jnp.dot(xb, wqkv_ref[0],
                  preferred_element_type=jnp.float32) + bqkv_ref[0]   # (S, 3D)
    # Fold the 1/sqrt(head_dim) scale into q (S*D elems instead of H*S*S).
    q = qkv[:, :D] * (1.0 / (head_dim ** 0.5))
    k = qkv[:, D:2 * D]
    v = qkv[:, 2 * D:]

    qb = q.astype(jnp.bfloat16)
    kb = k.astype(jnp.bfloat16)
    vb = v.astype(jnp.bfloat16)
    wo = wo_ref[0]                                   # (D, D) bf16

    # Heads stay packed on the lane axis; q @ k^T via dot_general dimension
    # numbers (no explicit transpose / relayout).  The output projection is
    # folded in:  concat_h(ctx_h) @ Wo  ==  sum_h  ctx_h @ Wo[h*hd:(h+1)*hd, :]
    attn_out = jnp.zeros((S, D), jnp.float32)
    for h in range(num_heads):
        sl = slice(h * head_dim, (h + 1) * head_dim)
        qh = qb[:, sl]                               # (S, hd)
        kh = kb[:, sl]
        vh = vb[:, sl]
        s = lax.dot_general(qh, kh, (((1,), (1,)), ((), ())),
                            preferred_element_type=jnp.float32)   # (S, S)
        s = s + bias
        m = jnp.max(s, axis=-1, keepdims=True)
        p = jnp.exp(s - m)                           # f32 softmax numerics
        p = p * pl.reciprocal(jnp.sum(p, axis=-1, keepdims=True), approx=True)
        ctx = jnp.dot(p.astype(jnp.bfloat16), vh,
                      preferred_element_type=jnp.float32)          # (S, hd)
        attn_out = attn_out + jnp.dot(ctx.astype(jnp.bfloat16), wo[sl, :],
                                      preferred_element_type=jnp.float32)
    attn_out = attn_out + bo_ref[0]

    h1 = _layer_norm(x + attn_out, ln1g_ref[0], ln1b_ref[0])

    # --- feed-forward ---
    ff = jnp.dot(h1.astype(jnp.bfloat16), w1_ref[0],
                 preferred_element_type=jnp.float32) + b1_ref[0]
    ff = jnp.maximum(ff, 0.0)
    ff = jnp.dot(ff.astype(jnp.bfloat16), w2_ref[0],
                 preferred_element_type=jnp.float32) + b2_ref[0]
    h2 = _layer_norm(h1 + ff, ln2g_ref[0], ln2b_ref[0])

    h_ref[...] = h2                                  # carry to next layer

    @pl.when(layer == last_layer)
    def _():
        o_ref[0] = h2


def encoder_stack(x, bias, stacked, *, num_heads, head_dim):
    """x: (B, S, D) f32 embedded inputs; bias: (B, 1, S) f32 additive pad bias.
    stacked: dict of per-layer-stacked parameters (leading axis = num_layers).
    Returns (B, S, D) f32."""
    B, S, D = x.shape
    L = stacked["wqkv"].shape[0]

    names = ["wqkv", "bqkv", "wo", "bo",
             "ln1_g", "ln1_b", "w1", "b1", "w2", "b2", "ln2_g", "ln2_b"]
    weights = [stacked[n] for n in names]

    def act_map(b, l):
        return (b, 0, 0)

    def layer_map(b, l):
        return (l, 0, 0)

    in_specs = [
        pl.BlockSpec((1, S, D), act_map),            # embedded inputs
        pl.BlockSpec((1, 1, S), act_map),            # additive key-pad bias
    ]
    # Stream exactly one layer's weights per grid step (double-buffered).
    in_specs += [pl.BlockSpec((1,) + w.shape[1:], layer_map) for w in weights]

    kernel = functools.partial(
        fused_encoder_kernel, num_heads=num_heads, head_dim=head_dim)

    return pl.pallas_call(
        kernel,
        out_shape=jax.ShapeDtypeStruct((B, S, D), jnp.float32),
        grid=(B, L),
        in_specs=in_specs,
        out_specs=pl.BlockSpec((1, S, D), act_map),
        scratch_shapes=[pltpu.VMEM((S, D), jnp.float32)],
        compiler_params=pltpu.CompilerParams(
            # Batch items are independent -> parallel (sharded across the two
            # TensorCores on v7x).  Layer axis carries the resident activation
            # and must run in order -> arbitrary.
            dimension_semantics=("parallel", "arbitrary"),
        ),
    )(x, bias, *weights)


# ------------------------------- glue (JAX) -------------------------------- #

def sinusoidal_pos_emb(max_len, model_dim):
    pos = jnp.arange(max_len, dtype=jnp.float32)[:, None]
    i = jnp.arange(model_dim, dtype=jnp.float32)[None, :]
    angle = pos / jnp.power(10000.0, (2.0 * jnp.floor(i / 2.0)) / model_dim)
    pe = jnp.where((jnp.arange(model_dim) % 2) == 0,
                   jnp.sin(angle), jnp.cos(angle))
    return pe.astype(jnp.float32)                    # (max_len, model_dim)


def key_pad_bias(tokens):
    """tokens: (B, S) int32 -> (B, 1, S) f32 additive bias; -1e9 at PAD keys."""
    return jnp.where(tokens == 0, -1e9, 0.0).astype(jnp.float32)[:, None, :]


def init_layer_params(key, model_dim, ff_dim):
    ks = jax.random.split(key, 6)
    std = 0.02
    return {
        "wq": jax.random.normal(ks[0], (model_dim, model_dim), jnp.float32) * std,
        "wk": jax.random.normal(ks[1], (model_dim, model_dim), jnp.float32) * std,
        "wv": jax.random.normal(ks[2], (model_dim, model_dim), jnp.float32) * std,
        "wo": jax.random.normal(ks[3], (model_dim, model_dim), jnp.float32) * std,
        "bq": jnp.zeros((1, model_dim), jnp.float32),
        "bk": jnp.zeros((1, model_dim), jnp.float32),
        "bv": jnp.zeros((1, model_dim), jnp.float32),
        "bo": jnp.zeros((1, model_dim), jnp.float32),
        "ln1_g": jnp.ones((1, model_dim), jnp.float32),
        "ln1_b": jnp.zeros((1, model_dim), jnp.float32),
        "w1": jax.random.normal(ks[4], (model_dim, ff_dim), jnp.float32) * std,
        "b1": jnp.zeros((1, ff_dim), jnp.float32),
        "w2": jax.random.normal(ks[5], (ff_dim, model_dim), jnp.float32) * std,
        "b2": jnp.zeros((1, model_dim), jnp.float32),
        "ln2_g": jnp.ones((1, model_dim), jnp.float32),
        "ln2_b": jnp.zeros((1, model_dim), jnp.float32),
    }


_BF16_NAMES = ("wqkv", "wo", "w1", "w2")


def stack_layer_params(layer_params):
    """Stack per-layer params along a leading layer axis.  Q/K/V weights and
    biases are fused into single (D, 3D) / (1, 3D) tensors; matmul weights are
    stored bf16 (MXU-native, halves weight DMA bytes)."""
    fused = []
    for p in layer_params:
        q = dict(p)
        q["wqkv"] = jnp.concatenate([p["wq"], p["wk"], p["wv"]], axis=-1)
        q["bqkv"] = jnp.concatenate([p["bq"], p["bk"], p["bv"]], axis=-1)
        fused.append(q)

    names = ["wqkv", "bqkv", "wo", "bo",
             "ln1_g", "ln1_b", "w1", "b1", "w2", "b2", "ln2_g", "ln2_b"]
    stacked = {}
    for name in names:
        w = jnp.stack([p[name] for p in fused], axis=0)
        if name in _BF16_NAMES:
            w = w.astype(jnp.bfloat16)
        stacked[name] = w
    return stacked


def encoder_forward(tokens, emb_table, pe_table, stacked, *, num_heads, head_dim):
    B, S = tokens.shape
    bias = key_pad_bias(tokens)                      # (B, 1, S) additive bias
    x = jnp.take(emb_table, tokens, axis=0)          # (B, S, D) embedding gather
    x = x + pe_table[:S][None, :, :]                 # positional embeddings
    return encoder_stack(x, bias, stacked, num_heads=num_heads, head_dim=head_dim)


# --------------------------------- main ------------------------------------ #

if __name__ == "__main__":
    # Small shapes consistent with the module's forward.
    vocab_size = 50
    model_dim = 32
    head_dim = 8
    num_heads = model_dim // head_dim    # MultiHeadAttention(head_dim); 512//head_dim in original
    ff_dim = 4 * model_dim
    max_len = 16
    num_layers = 6
    B, S = 2, 8

    root = jax.random.PRNGKey(0)
    k_emb, k_tok, *k_layers = jax.random.split(root, 2 + num_layers)

    emb_table = jax.random.normal(k_emb, (vocab_size, model_dim), jnp.float32) * 0.02
    pe_table = sinusoidal_pos_emb(max_len, model_dim)

    layer_params = [init_layer_params(k, model_dim, ff_dim) for k in k_layers]
    stacked = stack_layer_params(layer_params)

    tokens = jax.random.randint(k_tok, (B, S), 1, vocab_size, dtype=jnp.int32)
    tokens = tokens.at[:, -1].set(0)   # introduce PAD tokens to exercise the pad mask

    out = encoder_forward(tokens, emb_table, pe_table, stacked,
                          num_heads=num_heads, head_dim=head_dim)
    out = jax.block_until_ready(out)
    assert out.shape == (B, S, model_dim)
    assert bool(jnp.all(jnp.isfinite(out)))
    print("KERNEL_OK")
</pallas_src>

<mosaic_0001>
module attributes {stable_mosaic.version = 11 : i64} {
  func.func @fused_encoder_kernel(%arg0: i32, %arg1: i32, %arg2: memref<1x8x32xf32, #tpu.memory_space<vmem>>, %arg3: memref<1x1x8xf32, #tpu.memory_space<vmem>>, %arg4: memref<1x32x96xbf16, #tpu.memory_space<vmem>>, %arg5: memref<1x1x96xf32, #tpu.memory_space<vmem>>, %arg6: memref<1x32x32xbf16, #tpu.memory_space<vmem>>, %arg7: memref<1x1x32xf32, #tpu.memory_space<vmem>>, %arg8: memref<1x1x32xf32, #tpu.memory_space<vmem>>, %arg9: memref<1x1x32xf32, #tpu.memory_space<vmem>>, %arg10: memref<1x32x128xbf16, #tpu.memory_space<vmem>>, %arg11: memref<1x1x128xf32, #tpu.memory_space<vmem>>, %arg12: memref<1x128x32xbf16, #tpu.memory_space<vmem>>, %arg13: memref<1x1x32xf32, #tpu.memory_space<vmem>>, %arg14: memref<1x1x32xf32, #tpu.memory_space<vmem>>, %arg15: memref<1x1x32xf32, #tpu.memory_space<vmem>>, %arg16: memref<1x8x32xf32, #tpu.memory_space<vmem>>, %arg17: memref<8x32xf32, #tpu.memory_space<vmem>>) attributes {dimension_semantics = [#tpu.dimension_semantics<parallel>, #tpu.dimension_semantics<arbitrary>], iteration_bounds = array<i64: 2, 6>, scalar_prefetch = 0 : i64, scratch_operands = 1 : i64, tpu.core_type = #tpu.core_type<tc>, window_params = [{transform_indices = @transform_0, window_bounds = array<i64: 1, 8, 32>}, {transform_indices = @transform_1, window_bounds = array<i64: 1, 1, 8>}, {transform_indices = @transform_2, window_bounds = array<i64: 1, 32, 96>}, {transform_indices = @transform_3, window_bounds = array<i64: 1, 1, 96>}, {transform_indices = @transform_4, window_bounds = array<i64: 1, 32, 32>}, {transform_indices = @transform_5, window_bounds = array<i64: 1, 1, 32>}, {transform_indices = @transform_6, window_bounds = array<i64: 1, 1, 32>}, {transform_indices = @transform_7, window_bounds = array<i64: 1, 1, 32>}, {transform_indices = @transform_8, window_bounds = array<i64: 1, 32, 128>}, {transform_indices = @transform_9, window_bounds = array<i64: 1, 1, 128>}, {transform_indices = @transform_10, window_bounds = array<i64: 1, 128, 32>}, {transform_indices = @transform_11, window_bounds = array<i64: 1, 1, 32>}, {transform_indices = @transform_12, window_bounds = array<i64: 1, 1, 32>}, {transform_indices = @transform_13, window_bounds = array<i64: 1, 1, 32>}, {transform_indices = @transform_14, window_bounds = array<i64: 1, 8, 32>}]} {
    %c0_i32 = arith.constant 0 : i32
    %0 = arith.cmpi eq, %arg1, %c0_i32 : i32
    %1 = arith.extui %0 : i1 to i32
    %c0_i32_0 = arith.constant 0 : i32
    %2 = arith.cmpi ne, %1, %c0_i32_0 : i32
    scf.if %2 {
      %c0_79 = arith.constant 0 : index
      %c0_80 = arith.constant 0 : index
      %c0_81 = arith.constant 0 : index
      %193 = vector.load %arg2[%c0_79, %c0_80, %c0_81] : memref<1x8x32xf32, #tpu.memory_space<vmem>>, vector<1x8x32xf32>
      %194 = vector.shape_cast %193 : vector<1x8x32xf32> to vector<8x32xf32>
      %c0_82 = arith.constant 0 : index
      %c0_83 = arith.constant 0 : index
      %195 = vector.load %arg17[%c0_82, %c0_83] : memref<8x32xf32, #tpu.memory_space<vmem>>, vector<8x32xf32>
      tpu.vector_store %arg17[%c0_82, %c0_83], %194 {strides = array<i32>} : memref<8x32xf32, #tpu.memory_space<vmem>>, vector<8x32xf32>,
    } else {
    }
    %c0 = arith.constant 0 : index
    %c0_1 = arith.constant 0 : index
    %3 = vector.load %arg17[%c0, %c0_1] : memref<8x32xf32, #tpu.memory_space<vmem>>, vector<8x32xf32>
    %c0_2 = arith.constant 0 : index
    %c0_3 = arith.constant 0 : index
    %c0_4 = arith.constant 0 : index
    %4 = vector.load %arg3[%c0_2, %c0_3, %c0_4] : memref<1x1x8xf32, #tpu.memory_space<vmem>>, vector<1x1x8xf32>
    %5 = vector.shape_cast %4 : vector<1x1x8xf32> to vector<1x8xf32>
    %6 = arith.truncf %3 : vector<8x32xf32> to vector<8x32xbf16>
    %c0_5 = arith.constant 0 : index
    %c0_6 = arith.constant 0 : index
    %c0_7 = arith.constant 0 : index
    %7 = vector.load %arg4[%c0_5, %c0_6, %c0_7] : memref<1x32x96xbf16, #tpu.memory_space<vmem>>, vector<1x32x96xbf16>
    %8 = vector.shape_cast %7 : vector<1x32x96xbf16> to vector<32x96xbf16>
    %cst = arith.constant dense<0.000000e+00> : vector<8x96xf32>
    %9 = tpu.matmul %6, %8, %cst {dimension_numbers = #tpu.dot_dimension_numbers<[1], [0], [0], [1], [0, 0, 1, 1], [], []>} : vector<8x32xbf16>, vector<32x96xbf16>, vector<8x96xf32> -> vector<8x96xf32>
    %c0_8 = arith.constant 0 : index
    %c0_9 = arith.constant 0 : index
    %c0_10 = arith.constant 0 : index
    %10 = vector.load %arg5[%c0_8, %c0_9, %c0_10] : memref<1x1x96xf32, #tpu.memory_space<vmem>>, vector<1x1x96xf32>
    %11 = vector.shape_cast %10 : vector<1x1x96xf32> to vector<1x96xf32>
    %12 = vector.broadcast %11 : vector<1x96xf32> to vector<8x96xf32>
    %13 = arith.addf %9, %12 : vector<8x96xf32>
    %14 = vector.extract_strided_slice %13 {offsets = [0, 0], sizes = [8, 32], strides = [1, 1]} : vector<8x96xf32> to vector<8x32xf32>
    %cst_11 = arith.constant 0.353553385 : f32
    %15 = vector.broadcast %cst_11 : f32 to vector<8x32xf32>
    %16 = arith.mulf %14, %15 : vector<8x32xf32>
    %17 = vector.extract_strided_slice %13 {offsets = [0, 32], sizes = [8, 32], strides = [1, 1]} : vector<8x96xf32> to vector<8x32xf32>
    %18 = vector.extract_strided_slice %13 {offsets = [0, 64], sizes = [8, 32], strides = [1, 1]} : vector<8x96xf32> to vector<8x32xf32>
    %19 = arith.truncf %16 : vector<8x32xf32> to vector<8x32xbf16>
    %20 = arith.truncf %17 : vector<8x32xf32> to vector<8x32xbf16>
    %21 = arith.truncf %18 : vector<8x32xf32> to vector<8x32xbf16>
    %c0_12 = arith.constant 0 : index
    %c0_13 = arith.constant 0 : index
    %c0_14 = arith.constant 0 : index
    %22 = vector.load %arg6[%c0_12, %c0_13, %c0_14] : memref<1x32x32xbf16, #tpu.memory_space<vmem>>, vector<1x32x32xbf16>
    %23 = vector.shape_cast %22 : vector<1x32x32xbf16> to vector<32x32xbf16>
    %cst_15 = arith.constant 0.000000e+00 : f32
    %24 = vector.broadcast %cst_15 : f32 to vector<8x32xf32>
    %25 = vector.extract_strided_slice %19 {offsets = [0, 0], sizes = [8, 8], strides = [1, 1]} : vector<8x32xbf16> to vector<8x8xbf16>
    %26 = vector.extract_strided_slice %20 {offsets = [0, 0], sizes = [8, 8], strides = [1, 1]} : vector<8x32xbf16> to vector<8x8xbf16>
    %27 = vector.extract_strided_slice %21 {offsets = [0, 0], sizes = [8, 8], strides = [1, 1]} : vector<8x32xbf16> to vector<8x8xbf16>
    %cst_16 = arith.constant dense<0.000000e+00> : vector<8x8xf32>
    %28 = tpu.matmul %25, %26, %cst_16 {dimension_numbers = #tpu.dot_dimension_numbers<[1], [1], [0], [0], [0, 0, 1, 0], [], []>} : vector<8x8xbf16>, vector<8x8xbf16>, vector<8x8xf32> -> vector<8x8xf32>
    %29 = vector.broadcast %5 : vector<1x8xf32> to vector<8x8xf32>
    %30 = arith.addf %28, %29 : vector<8x8xf32>
    %cst_17 = arith.constant dense<0xFF800000> : vector<8xf32>
    %31 = vector.multi_reduction <maximumf>, %30, %cst_17 [1] : vector<8x8xf32> to vector<8xf32>
    %32 = vector.shape_cast %31 : vector<8xf32> to vector<8x1xf32>
    %33 = vector.broadcast %32 : vector<8x1xf32> to vector<8x8xf32>
    %34 = arith.subf %30, %33 : vector<8x8xf32>
    %35 = math.exp %34 : vector<8x8xf32>
    %cst_18 = arith.constant dense<0.000000e+00> : vector<8xf32>
    %36 = vector.multi_reduction <add>, %35, %cst_18 [1] : vector<8x8xf32> to vector<8xf32>
    %37 = vector.shape_cast %36 : vector<8xf32> to vector<8x1xf32>
    %38 = tpu.reciprocal %37 {approx = true} : vector<8x1xf32> -> vector<8x1xf32>
    %39 = vector.broadcast %38 : vector<8x1xf32> to vector<8x8xf32>
    %40 = arith.mulf %35, %39 : vector<8x8xf32>
    %41 = arith.truncf %40 : vector<8x8xf32> to vector<8x8xbf16>
    %cst_19 = arith.constant dense<0.000000e+00> : vector<8x8xf32>
    %42 = tpu.matmul %41, %27, %cst_19 {dimension_numbers = #tpu.dot_dimension_numbers<[1], [0], [0], [1], [0, 0, 1, 1], [], []>} : vector<8x8xbf16>, vector<8x8xbf16>, vector<8x8xf32> -> vector<8x8xf32>
    %43 = arith.truncf %42 : vector<8x8xf32> to vector<8x8xbf16>
    %44 = vector.extract_strided_slice %23 {offsets = [0, 0], sizes = [8, 32], strides = [1, 1]} : vector<32x32xbf16> to vector<8x32xbf16>
    %cst_20 = arith.constant dense<0.000000e+00> : vector<8x32xf32>
    %45 = tpu.matmul %43, %44, %cst_20 {dimension_numbers = #tpu.dot_dimension_numbers<[1], [0], [0], [1], [0, 0, 1, 1], [], []>} : vector<8x8xbf16>, vector<8x32xbf16>, vector<8x32xf32> -> vector<8x32xf32>
    %46 = arith.addf %24, %45 : vector<8x32xf32>
    %47 = vector.extract_strided_slice %19 {offsets = [0, 8], sizes = [8, 8], strides = [1, 1]} : vector<8x32xbf16> to vector<8x8xbf16>
    %48 = vector.extract_strided_slice %20 {offsets = [0, 8], sizes = [8, 8], strides = [1, 1]} : vector<8x32xbf16> to vector<8x8xbf16>
    %49 = vector.extract_strided_slice %21 {offsets = [0, 8], sizes = [8, 8], strides = [1, 1]} : vector<8x32xbf16> to vector<8x8xbf16>
    %cst_21 = arith.constant dense<0.000000e+00> : vector<8x8xf32>
    %50 = tpu.matmul %47, %48, %cst_21 {dimension_numbers = #tpu.dot_dimension_numbers<[1], [1], [0], [0], [0, 0, 1, 0], [], []>} : vector<8x8xbf16>, vector<8x8xbf16>, vector<8x8xf32> -> vector<8x8xf32>
    %51 = vector.broadcast %5 : vector<1x8xf32> to vector<8x8xf32>
    %52 = arith.addf %50, %51 : vector<8x8xf32>
    %cst_22 = arith.constant dense<0xFF800000> : vector<8xf32>
    %53 = vector.multi_reduction <maximumf>, %52, %cst_22 [1] : vector<8x8xf32> to vector<8xf32>
    %54 = vector.shape_cast %53 : vector<8xf32> to vector<8x1xf32>
    %55 = vector.broadcast %54 : vector<8x1xf32> to vector<8x8xf32>
    %56 = arith.subf %52, %55 : vector<8x8xf32>
    %57 = math.exp %56 : vector<8x8xf32>
    %cst_23 = arith.constant dense<0.000000e+00> : vector<8xf32>
    %58 = vector.multi_reduction <add>, %57, %cst_23 [1] : vector<8x8xf32> to vector<8xf32>
    %59 = vector.shape_cast %58 : vector<8xf32> to vector<8x1xf32>
    %60 = tpu.reciprocal %59 {approx = true} : vector<8x1xf32> -> vector<8x1xf32>
    %61 = vector.broadcast %60 : vector<8x1xf32> to vector<8x8xf32>
    %62 = arith.mulf %57, %61 : vector<8x8xf32>
    %63 = arith.truncf %62 : vector<8x8xf32> to vector<8x8xbf16>
    %cst_24 = arith.constant dense<0.000000e+00> : vector<8x8xf32>
    %64 = tpu.matmul %63, %49, %cst_24 {dimension_numbers = #tpu.dot_dimension_numbers<[1], [0], [0], [1], [0, 0, 1, 1], [], []>} : vector<8x8xbf16>, vector<8x8xbf16>, vector<8x8xf32> -> vector<8x8xf32>
    %65 = arith.truncf %64 : vector<8x8xf32> to vector<8x8xbf16>
    %66 = vector.extract_strided_slice %23 {offsets = [8, 0], sizes = [8, 32], strides = [1, 1]} : vector<32x32xbf16> to vector<8x32xbf16>
    %cst_25 = arith.constant dense<0.000000e+00> : vector<8x32xf32>
    %67 = tpu.matmul %65, %66, %cst_25 {dimension_numbers = #tpu.dot_dimension_numbers<[1], [0], [0], [1], [0, 0, 1, 1], [], []>} : vector<8x8xbf16>, vector<8x32xbf16>, vector<8x32xf32> -> vector<8x32xf32>
    %68 = arith.addf %46, %67 : vector<8x32xf32>
    %69 = vector.extract_strided_slice %19 {offsets = [0, 16], sizes = [8, 8], strides = [1, 1]} : vector<8x32xbf16> to vector<8x8xbf16>
    %70 = vector.extract_strided_slice %20 {offsets = [0, 16], sizes = [8, 8], strides = [1, 1]} : vector<8x32xbf16> to vector<8x8xbf16>
    %71 = vector.extract_strided_slice %21 {offsets = [0, 16], sizes = [8, 8], strides = [1, 1]} : vector<8x32xbf16> to vector<8x8xbf16>
    %cst_26 = arith.constant dense<0.000000e+00> : vector<8x8xf32>
    %72 = tpu.matmul %69, %70, %cst_26 {dimension_numbers = #tpu.dot_dimension_numbers<[1], [1], [0], [0], [0, 0, 1, 0], [], []>} : vector<8x8xbf16>, vector<8x8xbf16>, vector<8x8xf32> -> vector<8x8xf32>
    %73 = vector.broadcast %5 : vector<1x8xf32> to vector<8x8xf32>
    %74 = arith.addf %72, %73 : vector<8x8xf32>
    %cst_27 = arith.constant dense<0xFF800000> : vector<8xf32>
    %75 = vector.multi_reduction <maximumf>, %74, %cst_27 [1] : vector<8x8xf32> to vector<8xf32>
    %76 = vector.shape_cast %75 : vector<8xf32> to vector<8x1xf32>
    %77 = vector.broadcast %76 : vector<8x1xf32> to vector<8x8xf32>
    %78 = arith.subf %74, %77 : vector<8x8xf32>
    %79 = math.exp %78 : vector<8x8xf32>
    %cst_28 = arith.constant dense<0.000000e+00> : vector<8xf32>
    %80 = vector.multi_reduction <add>, %79, %cst_28 [1] : vector<8x8xf32> to vector<8xf32>
    %81 = vector.shape_cast %80 : vector<8xf32> to vector<8x1xf32>
    %82 = tpu.reciprocal %81 {approx = true} : vector<8x1xf32> -> vector<8x1xf32>
    %83 = vector.broadcast %82 : vector<8x1xf32> to vector<8x8xf32>
    %84 = arith.mulf %79, %83 : vector<8x8xf32>
    %85 = arith.truncf %84 : vector<8x8xf32> to vector<8x8xbf16>
    %cst_29 = arith.constant dense<0.000000e+00> : vector<8x8xf32>
    %86 = tpu.matmul %85, %71, %cst_29 {dimension_numbers = #tpu.dot_dimension_numbers<[1], [0], [0], [1], [0, 0, 1, 1], [], []>} : vector<8x8xbf16>, vector<8x8xbf16>, vector<8x8xf32> -> vector<8x8xf32>
    %87 = arith.truncf %86 : vector<8x8xf32> to vector<8x8xbf16>
    %88 = vector.extract_strided_slice %23 {offsets = [16, 0], sizes = [8, 32], strides = [1, 1]} : vector<32x32xbf16> to vector<8x32xbf16>
    %cst_30 = arith.constant dense<0.000000e+00> : vector<8x32xf32>
    %89 = tpu.matmul %87, %88, %cst_30 {dimension_numbers = #tpu.dot_dimension_numbers<[1], [0], [0], [1], [0, 0, 1, 1], [], []>} : vector<8x8xbf16>, vector<8x32xbf16>, vector<8x32xf32> -> vector<8x32xf32>
    %90 = arith.addf %68, %89 : vector<8x32xf32>
    %91 = vector.extract_strided_slice %19 {offsets = [0, 24], sizes = [8, 8], strides = [1, 1]} : vector<8x32xbf16> to vector<8x8xbf16>
    %92 = vector.extract_strided_slice %20 {offsets = [0, 24], sizes = [8, 8], strides = [1, 1]} : vector<8x32xbf16> to vector<8x8xbf16>
    %93 = vector.extract_strided_slice %21 {offsets = [0, 24], sizes = [8, 8], strides = [1, 1]} : vector<8x32xbf16> to vector<8x8xbf16>
    %cst_31 = arith.constant dense<0.000000e+00> : vector<8x8xf32>
    %94 = tpu.matmul %91, %92, %cst_31 {dimension_numbers = #tpu.dot_dimension_numbers<[1], [1], [0], [0], [0, 0, 1, 0], [], []>} : vector<8x8xbf16>, vector<8x8xbf16>, vector<8x8xf32> -> vector<8x8xf32>
    %95 = vector.broadcast %5 : vector<1x8xf32> to vector<8x8xf32>
    %96 = arith.addf %94, %95 : vector<8x8xf32>
    %cst_32 = arith.constant dense<0xFF800000> : vector<8xf32>
    %97 = vector.multi_reduction <maximumf>, %96, %cst_32 [1] : vector<8x8xf32> to vector<8xf32>
    %98 = vector.shape_cast %97 : vector<8xf32> to vector<8x1xf32>
    %99 = vector.broadcast %98 : vector<8x1xf32> to vector<8x8xf32>
    %100 = arith.subf %96, %99 : vector<8x8xf32>
    %101 = math.exp %100 : vector<8x8xf32>
    %cst_33 = arith.constant dense<0.000000e+00> : vector<8xf32>
    %102 = vector.multi_reduction <add>, %101, %cst_33 [1] : vector<8x8xf32> to vector<8xf32>
    %103 = vector.shape_cast %102 : vector<8xf32> to vector<8x1xf32>
    %104 = tpu.reciprocal %103 {approx = true} : vector<8x1xf32> -> vector<8x1xf32>
    %105 = vector.broadcast %104 : vector<8x1xf32> to vector<8x8xf32>
    %106 = arith.mulf %101, %105 : vector<8x8xf32>
    %107 = arith.truncf %106 : vector<8x8xf32> to vector<8x8xbf16>
    %cst_34 = arith.constant dense<0.000000e+00> : vector<8x8xf32>
    %108 = tpu.matmul %107, %93, %cst_34 {dimension_numbers = #tpu.dot_dimension_numbers<[1], [0], [0], [1], [0, 0, 1, 1], [], []>} : vector<8x8xbf16>, vector<8x8xbf16>, vector<8x8xf32> -> vector<8x8xf32>
    %109 = arith.truncf %108 : vector<8x8xf32> to vector<8x8xbf16>
    %110 = vector.extract_strided_slice %23 {offsets = [24, 0], sizes = [8, 32], strides = [1, 1]} : vector<32x32xbf16> to vector<8x32xbf16>
    %cst_35 = arith.constant dense<0.000000e+00> : vector<8x32xf32>
    %111 = tpu.matmul %109, %110, %cst_35 {dimension_numbers = #tpu.dot_dimension_numbers<[1], [0], [0], [1], [0, 0, 1, 1], [], []>} : vector<8x8xbf16>, vector<8x32xbf16>, vector<8x32xf32> -> vector<8x32xf32>
    %112 = arith.addf %90, %111 : vector<8x32xf32>
    %c0_36 = arith.constant 0 : index
    %c0_37 = arith.constant 0 : index
    %c0_38 = arith.constant 0 : index
    %113 = vector.load %arg7[%c0_36, %c0_37, %c0_38] : memref<1x1x32xf32, #tpu.memory_space<vmem>>, vector<1x1x32xf32>
    %114 = vector.shape_cast %113 : vector<1x1x32xf32> to vector<1x32xf32>
    %115 = vector.broadcast %114 : vector<1x32xf32> to vector<8x32xf32>
    %116 = arith.addf %112, %115 : vector<8x32xf32>
    %117 = arith.addf %3, %116 : vector<8x32xf32>
    %c0_39 = arith.constant 0 : index
    %c0_40 = arith.constant 0 : index
    %c0_41 = arith.constant 0 : index
    %118 = vector.load %arg8[%c0_39, %c0_40, %c0_41] : memref<1x1x32xf32, #tpu.memory_space<vmem>>, vector<1x1x32xf32>
    %119 = vector.shape_cast %118 : vector<1x1x32xf32> to vector<1x32xf32>
    %c0_42 = arith.constant 0 : index
    %c0_43 = arith.constant 0 : index
    %c0_44 = arith.constant 0 : index
    %120 = vector.load %arg9[%c0_42, %c0_43, %c0_44] : memref<1x1x32xf32, #tpu.memory_space<vmem>>, vector<1x1x32xf32>
    %121 = vector.shape_cast %120 : vector<1x1x32xf32> to vector<1x32xf32>
    %cst_45 = arith.constant dense<0.000000e+00> : vector<8xf32>
    %122 = vector.multi_reduction <add>, %117, %cst_45 [1] : vector<8x32xf32> to vector<8xf32>
    %123 = vector.shape_cast %122 : vector<8xf32> to vector<8x1xf32>
    %cst_46 = arith.constant 3.200000e+01 : f32
    %124 = vector.broadcast %cst_46 : f32 to vector<8x1xf32>
    %125 = arith.divf %123, %124 : vector<8x1xf32>
    %126 = vector.broadcast %125 : vector<8x1xf32> to vector<8x32xf32>
    %127 = arith.subf %117, %126 : vector<8x32xf32>
    %128 = arith.mulf %127, %127 : vector<8x32xf32>
    %cst_47 = arith.constant dense<0.000000e+00> : vector<8xf32>
    %129 = vector.multi_reduction <add>, %128, %cst_47 [1] : vector<8x32xf32> to vector<8xf32>
    %130 = vector.shape_cast %129 : vector<8xf32> to vector<8x1xf32>
    %cst_48 = arith.constant 3.200000e+01 : f32
    %131 = vector.broadcast %cst_48 : f32 to vector<8x1xf32>
    %132 = arith.divf %130, %131 : vector<8x1xf32>
    %133 = vector.broadcast %125 : vector<8x1xf32> to vector<8x32xf32>
    %134 = arith.subf %117, %133 : vector<8x32xf32>
    %cst_49 = arith.constant 9.99999974E-6 : f32
    %135 = vector.broadcast %cst_49 : f32 to vector<8x1xf32>
    %136 = arith.addf %132, %135 : vector<8x1xf32>
    %137 = math.rsqrt %136 : vector<8x1xf32>
    %138 = vector.broadcast %137 : vector<8x1xf32> to vector<8x32xf32>
    %139 = arith.mulf %134, %138 : vector<8x32xf32>
    %140 = vector.broadcast %119 : vector<1x32xf32> to vector<8x32xf32>
    %141 = arith.mulf %139, %140 : vector<8x32xf32>
    %142 = vector.broadcast %121 : vector<1x32xf32> to vector<8x32xf32>
    %143 = arith.addf %141, %142 : vector<8x32xf32>
    %144 = arith.truncf %143 : vector<8x32xf32> to vector<8x32xbf16>
    %c0_50 = arith.constant 0 : index
    %c0_51 = arith.constant 0 : index
    %c0_52 = arith.constant 0 : index
    %145 = vector.load %arg10[%c0_50, %c0_51, %c0_52] : memref<1x32x128xbf16, #tpu.memory_space<vmem>>, vector<1x32x128xbf16>
    %146 = vector.shape_cast %145 : vector<1x32x128xbf16> to vector<32x128xbf16>
    %cst_53 = arith.constant dense<0.000000e+00> : vector<8x128xf32>
    %147 = tpu.matmul %144, %146, %cst_53 {dimension_numbers = #tpu.dot_dimension_numbers<[1], [0], [0], [1], [0, 0, 1, 1], [], []>} : vector<8x32xbf16>, vector<32x128xbf16>, vector<8x128xf32> -> vector<8x128xf32>
    %c0_54 = arith.constant 0 : index
    %c0_55 = arith.constant 0 : index
    %c0_56 = arith.constant 0 : index
    %148 = vector.load %arg11[%c0_54, %c0_55, %c0_56] : memref<1x1x128xf32, #tpu.memory_space<vmem>>, vector<1x1x128xf32>
    %149 = vector.shape_cast %148 : vector<1x1x128xf32> to vector<1x128xf32>
    %150 = vector.broadcast %149 : vector<1x128xf32> to vector<8x128xf32>
    %151 = arith.addf %147, %150 : vector<8x128xf32>
    %cst_57 = arith.constant 0.000000e+00 : f32
    %152 = vector.broadcast %cst_57 : f32 to vector<8x128xf32>
    %153 = arith.maximumf %151, %152 : vector<8x128xf32>
    %154 = arith.truncf %153 : vector<8x128xf32> to vector<8x128xbf16>
    %c0_58 = arith.constant 0 : index
    %c0_59 = arith.constant 0 : index
    %c0_60 = arith.constant 0 : index
    %155 = vector.load %arg12[%c0_58, %c0_59, %c0_60] : memref<1x128x32xbf16, #tpu.memory_space<vmem>>, vector<1x128x32xbf16>
    %156 = vector.shape_cast %155 : vector<1x128x32xbf16> to vector<128x32xbf16>
    %cst_61 = arith.constant dense<0.000000e+00> : vector<8x32xf32>
    %157 = tpu.matmul %154, %156, %cst_61 {dimension_numbers = #tpu.dot_dimension_numbers<[1], [0], [0], [1], [0, 0, 1, 1], [], []>} : vector<8x128xbf16>, vector<128x32xbf16>, vector<8x32xf32> -> vector<8x32xf32>
    %c0_62 = arith.constant 0 : index
    %c0_63 = arith.constant 0 : index
    %c0_64 = arith.constant 0 : index
    %158 = vector.load %arg13[%c0_62, %c0_63, %c0_64] : memref<1x1x32xf32, #tpu.memory_space<vmem>>, vector<1x1x32xf32>
    %159 = vector.shape_cast %158 : vector<1x1x32xf32> to vector<1x32xf32>
    %160 = vector.broadcast %159 : vector<1x32xf32> to vector<8x32xf32>
    %161 = arith.addf %157, %160 : vector<8x32xf32>
    %162 = arith.addf %143, %161 : vector<8x32xf32>
    %c0_65 = arith.constant 0 : index
    %c0_66 = arith.constant 0 : index
    %c0_67 = arith.constant 0 : index
    %163 = vector.load %arg14[%c0_65, %c0_66, %c0_67] : memref<1x1x32xf32, #tpu.memory_space<vmem>>, vector<1x1x32xf32>
    %164 = vector.shape_cast %163 : vector<1x1x32xf32> to vector<1x32xf32>
    %c0_68 = arith.constant 0 : index
    %c0_69 = arith.constant 0 : index
    %c0_70 = arith.constant 0 : index
    %165 = vector.load %arg15[%c0_68, %c0_69, %c0_70] : memref<1x1x32xf32, #tpu.memory_space<vmem>>, vector<1x1x32xf32>
    %166 = vector.shape_cast %165 : vector<1x1x32xf32> to vector<1x32xf32>
    %cst_71 = arith.constant dense<0.000000e+00> : vector<8xf32>
    %167 = vector.multi_reduction <add>, %162, %cst_71 [1] : vector<8x32xf32> to vector<8xf32>
    %168 = vector.shape_cast %167 : vector<8xf32> to vector<8x1xf32>
    %cst_72 = arith.constant 3.200000e+01 : f32
    %169 = vector.broadcast %cst_72 : f32 to vector<8x1xf32>
    %170 = arith.divf %168, %169 : vector<8x1xf32>
    %171 = vector.broadcast %170 : vector<8x1xf32> to vector<8x32xf32>
    %172 = arith.subf %162, %171 : vector<8x32xf32>
    %173 = arith.mulf %172, %172 : vector<8x32xf32>
    %cst_73 = arith.constant dense<0.000000e+00> : vector<8xf32>
    %174 = vector.multi_reduction <add>, %173, %cst_73 [1] : vector<8x32xf32> to vector<8xf32>
    %175 = vector.shape_cast %174 : vector<8xf32> to vector<8x1xf32>
    %cst_74 = arith.constant 3.200000e+01 : f32
    %176 = vector.broadcast %cst_74 : f32 to vector<8x1xf32>
    %177 = arith.divf %175, %176 : vector<8x1xf32>
    %178 = vector.broadcast %170 : vector<8x1xf32> to vector<8x32xf32>
    %179 = arith.subf %162, %178 : vector<8x32xf32>
    %cst_75 = arith.constant 9.99999974E-6 : f32
    %180 = vector.broadcast %cst_75 : f32 to vector<8x1xf32>
    %181 = arith.addf %177, %180 : vector<8x1xf32>
    %182 = math.rsqrt %181 : vector<8x1xf32>
    %183 = vector.broadcast %182 : vector<8x1xf32> to vector<8x32xf32>
    %184 = arith.mulf %179, %183 : vector<8x32xf32>
    %185 = vector.broadcast %164 : vector<1x32xf32> to vector<8x32xf32>
    %186 = arith.mulf %184, %185 : vector<8x32xf32>
    %187 = vector.broadcast %166 : vector<1x32xf32> to vector<8x32xf32>
    %188 = arith.addf %186, %187 : vector<8x32xf32>
    %c0_76 = arith.constant 0 : index
    %c0_77 = arith.constant 0 : index
    %189 = vector.load %arg17[%c0_76, %c0_77] : memref<8x32xf32, #tpu.memory_space<vmem>>, vector<8x32xf32>
    tpu.vector_store %arg17[%c0_76, %c0_77], %188 {strides = array<i32>} : memref<8x32xf32, #tpu.memory_space<vmem>>, vector<8x32xf32>,
    %c5_i32 = arith.constant 5 : i32
    %190 = arith.cmpi eq, %arg1, %c5_i32 : i32
    %191 = arith.extui %190 : i1 to i32
    %c0_i32_78 = arith.constant 0 : i32
    %192 = arith.cmpi ne, %191, %c0_i32_78 : i32
    scf.if %192 {
      %c0_79 = arith.constant 0 : index
      %c0_80 = arith.constant 0 : index
      %c0_81 = arith.constant 0 : index
      %193 = vector.load %arg16[%c0_79, %c0_80, %c0_81] : memref<1x8x32xf32, #tpu.memory_space<vmem>>, vector<1x8x32xf32>
      %194 = vector.shape_cast %193 : vector<1x8x32xf32> to vector<8x32xf32>
      %195 = vector.shape_cast %188 : vector<8x32xf32> to vector<1x8x32xf32>
      tpu.vector_store %arg16[%c0_79, %c0_80, %c0_81], %195 {strides = array<i32>} : memref<1x8x32xf32, #tpu.memory_space<vmem>>, vector<1x8x32xf32>,
    } else {
    }
    return
  }
  func.func @transform_0(%arg0: i32, %arg1: i32) -> (i32, i32, i32) {
    %c0_i32 = arith.constant 0 : i32
    %c0_i32_0 = arith.constant 0 : i32
    %c0_i32_1 = arith.constant 0 : i32
    return %arg0, %c0_i32, %c0_i32_0 : i32, i32, i32
  }
  func.func @transform_1(%arg0: i32, %arg1: i32) -> (i32, i32, i32) {
    %c0_i32 = arith.constant 0 : i32
    %c0_i32_0 = arith.constant 0 : i32
    %c0_i32_1 = arith.constant 0 : i32
    return %arg0, %c0_i32, %c0_i32_0 : i32, i32, i32
  }
  func.func @transform_2(%arg0: i32, %arg1: i32) -> (i32, i32, i32) {
    %c0_i32 = arith.constant 0 : i32
    %c0_i32_0 = arith.constant 0 : i32
    %c0_i32_1 = arith.constant 0 : i32
    return %arg1, %c0_i32, %c0_i32_0 : i32, i32, i32
  }
  func.func @transform_3(%arg0: i32, %arg1: i32) -> (i32, i32, i32) {
    %c0_i32 = arith.constant 0 : i32
    %c0_i32_0 = arith.constant 0 : i32
    %c0_i32_1 = arith.constant 0 : i32
    return %arg1, %c0_i32, %c0_i32_0 : i32, i32, i32
  }
  func.func @transform_4(%arg0: i32, %arg1: i32) -> (i32, i32, i32) {
    %c0_i32 = arith.constant 0 : i32
    %c0_i32_0 = arith.constant 0 : i32
    %c0_i32_1 = arith.constant 0 : i32
    return %arg1, %c0_i32, %c0_i32_0 : i32, i32, i32
  }
  func.func @transform_5(%arg0: i32, %arg1: i32) -> (i32, i32, i32) {
    %c0_i32 = arith.constant 0 : i32
    %c0_i32_0 = arith.constant 0 : i32
    %c0_i32_1 = arith.constant 0 : i32
    return %arg1, %c0_i32, %c0_i32_0 : i32, i32, i32
  }
  func.func @transform_6(%arg0: i32, %arg1: i32) -> (i32, i32, i32) {
    %c0_i32 = arith.constant 0 : i32
    %c0_i32_0 = arith.constant 0 : i32
    %c0_i32_1 = arith.constant 0 : i32
    return %arg1, %c0_i32, %c0_i32_0 : i32, i32, i32
  }
  func.func @transform_7(%arg0: i32, %arg1: i32) -> (i32, i32, i32) {
    %c0_i32 = arith.constant 0 : i32
    %c0_i32_0 = arith.constant 0 : i32
    %c0_i32_1 = arith.constant 0 : i32
    return %arg1, %c0_i32, %c0_i32_0 : i32, i32, i32
  }
  func.func @transform_8(%arg0: i32, %arg1: i32) -> (i32, i32, i32) {
    %c0_i32 = arith.constant 0 : i32
    %c0_i32_0 = arith.constant 0 : i32
    %c0_i32_1 = arith.constant 0 : i32
    return %arg1, %c0_i32, %c0_i32_0 : i32, i32, i32
  }
  func.func @transform_9(%arg0: i32, %arg1: i32) -> (i32, i32, i32) {
    %c0_i32 = arith.constant 0 : i32
    %c0_i32_0 = arith.constant 0 : i32
    %c0_i32_1 = arith.constant 0 : i32
    return %arg1, %c0_i32, %c0_i32_0 : i32, i32, i32
  }
  func.func @transform_10(%arg0: i32, %arg1: i32) -> (i32, i32, i32) {
    %c0_i32 = arith.constant 0 : i32
    %c0_i32_0 = arith.constant 0 : i32
    %c0_i32_1 = arith.constant 0 : i32
    return %arg1, %c0_i32, %c0_i32_0 : i32, i32, i32
  }
  func.func @transform_11(%arg0: i32, %arg1: i32) -> (i32, i32, i32) {
    %c0_i32 = arith.constant 0 : i32
    %c0_i32_0 = arith.constant 0 : i32
    %c0_i32_1 = arith.constant 0 : i32
    return %arg1, %c0_i32, %c0_i32_0 : i32, i32, i32
  }
  func.func @transform_12(%arg0: i32, %arg1: i32) -> (i32, i32, i32) {
    %c0_i32 = arith.constant 0 : i32
    %c0_i32_0 = arith.constant 0 : i32
    %c0_i32_1 = arith.constant 0 : i32
    return %arg1, %c0_i32, %c0_i32_0 : i32, i32, i32
  }
  func.func @transform_13(%arg0: i32, %arg1: i32) -> (i32, i32, i32) {
    %c0_i32 = arith.constant 0 : i32
    %c0_i32_0 = arith.constant 0 : i32
    %c0_i32_1 = arith.constant 0 : i32
    return %arg1, %c0_i32, %c0_i32_0 : i32, i32, i32
  }
  func.func @transform_14(%arg0: i32, %arg1: i32) -> (i32, i32, i32) {
    %c0_i32 = arith.constant 0 : i32
    %c0_i32_0 = arith.constant 0 : i32
    %c0_i32_1 = arith.constant 0 : i32
    return %arg0, %c0_i32, %c0_i32_0 : i32, i32, i32
  }
}

</mosaic_0001>

<llo_original>
// kernel: tpu_custom_call.1
$region0: #{tpu_custom_call.1}
  #allocation0 [shape = 'u32[]', space=smem, size = 0x4, offset = 0x4, fixed_abs, tag = 'smem constant byte address 0x4 - core index']
  #allocation1 [shape = 'u32[144,128]{1,0:T(1,128)}', space=vmem, size = 0x12000, scoped, tag = 'internal scratch']
  #allocation2 [shape = 'f32[8,32]{1,0:T(8,128)}', space=vmem, size = 0x1000, scoped, tag = 'scratch operand']
  %s0 = inlined_call_operand.vmem [shape: f32[2,8,32], index: 0, kind: input, shape index: {}]
  %s1 = inlined_call_operand.vmem [shape: f32[2,1,8], index: 1, kind: input, shape index: {}]
  %s2 = inlined_call_operand.vmem [shape: bf16[6,32,96], index: 2, kind: input, shape index: {}]
  %s3 = inlined_call_operand.vmem [shape: f32[6,1,96], index: 3, kind: input, shape index: {}]
  %s4 = inlined_call_operand.vmem [shape: bf16[6,32,32], index: 4, kind: input, shape index: {}]
  %s5 = inlined_call_operand.vmem [shape: f32[6,1,32], index: 5, kind: input, shape index: {}]
  %s6 = inlined_call_operand.vmem [shape: f32[6,1,32], index: 6, kind: input, shape index: {}]
  %s7 = inlined_call_operand.vmem [shape: f32[6,1,32], index: 7, kind: input, shape index: {}]
  %s8 = inlined_call_operand.vmem [shape: bf16[6,32,128], index: 8, kind: input, shape index: {}]
  %s9 = inlined_call_operand.vmem [shape: f32[6,1,128], index: 9, kind: input, shape index: {}]
  %s10 = inlined_call_operand.vmem [shape: bf16[6,128,32], index: 10, kind: input, shape index: {}]
  %s11 = inlined_call_operand.vmem [shape: f32[6,1,32], index: 11, kind: input, shape index: {}]
  %s12 = inlined_call_operand.vmem [shape: f32[6,1,32], index: 12, kind: input, shape index: {}]
  %s13 = inlined_call_operand.vmem [shape: f32[6,1,32], index: 13, kind: input, shape index: {}]
  %s14 = inlined_call_operand.hbm [shape: f32[2,8,32], index: 14, kind: output, shape index: {}]
  %s15 = sld [smem:[#allocation0]]
  $region97: #{tpu_custom_call.1} parent=0
    _
  %s17 = ssub.s32 1, %s15
  %s18 = scalar_select 0, %s17, %s15
  $region1: #{tpu_custom_call.1} parent=0
    #allocation3 [shape = 'u8[8192]{0}', space=vmem, size = 0x2000, scoped, tag = 'output window, operand 0']
    #allocation4 [shape = 's32[2]{0}', space=sflag, size = 0x8, scoped, tag = 'scoped memory for tpu_custom_call.1']
    %19 = vsyncpa [#allocation4], 0
    %s20 = scalar_lea.sflag [#allocation4], 1
    %21 = vsyncpa %s20, 0
    loop: start=0, step=1, limit=14
    $region2: #{tpu_custom_call.1} parent=1 // loop_pre_header
      _
    $region3: #{tpu_custom_call.1} parent=1 // loop_header
      %s23 = sphi 0, %s27
      %p24 = scmp.ge.s32.totalorder %s23, 14
      %s30 = sphi 0, %s42
      %s31 = sphi 0, %s38
      %s32 = sphi 0, %s30
      %s33 = sphi 0, %s31
      %s34 = sphi 0, %s32
      %s35 = sphi 0, %s33
      %s45 = sphi 0, %s47
      %s48 = sphi 0, %s45
      %s49 = sphi 0, %s48
      %s65 = sphi 0, %s49
      %s71 = sphi 0, %s73
      %s74 = sphi 0, %s71
      %s75 = sphi 0, %s74
      %s91 = sphi 0, %s75
      %s97 = sphi 0, %s99
      %s100 = sphi 0, %s97
      %s101 = sphi 0, %s100
      %s117 = sphi 0, %s101
      %s123 = sphi 0, %s125
      %s126 = sphi 0, %s123
      %s127 = sphi 0, %s126
      %s143 = sphi 0, %s127
      %s149 = sphi 0, %s151
      %s152 = sphi 0, %s149
      %s153 = sphi 0, %s152
      %s169 = sphi 0, %s153
      %s175 = sphi 0, %s177
      %s178 = sphi 0, %s175
      %s179 = sphi 0, %s178
      %s195 = sphi 0, %s179
      %s201 = sphi 0, %s203
      %s204 = sphi 0, %s201
      %s205 = sphi 0, %s204
      %s221 = sphi 0, %s205
      %s227 = sphi 0, %s229
      %s230 = sphi 0, %s227
      %s231 = sphi 0, %s230
      %s247 = sphi 0, %s231
      %s253 = sphi 0, %s255
      %s256 = sphi 0, %s253
      %s257 = sphi 0, %s256
      %s273 = sphi 0, %s257
      %s279 = sphi 0, %s281
      %s282 = sphi 0, %s279
      %s283 = sphi 0, %s282
      %s299 = sphi 0, %s283
      %s305 = sphi 0, %s307
      %s308 = sphi 0, %s305
      %s309 = sphi 0, %s308
      %s325 = sphi 0, %s309
      %s331 = sphi 0, %s333
      %s334 = sphi 0, %s331
      %s335 = sphi 0, %s334
      %s351 = sphi 0, %s335
      %s357 = sphi 0, %s359
      %s360 = sphi 0, %s357
      %s361 = sphi 0, %s360
      %s377 = sphi 0, %s361
      %s383 = sphi 0, %s385
      %s386 = sphi 0, %s383
      %s387 = sphi 0, %s386
      %s403 = sphi 0, %s387
      %s409 = sphi 0, %s411
      %s412 = sphi 0, %s409
      %s413 = sphi 0, %s412
      %s429 = sphi 0, %s413
    $region4: #{tpu_custom_call.1} parent=1 // loop_header_branch
      %26 = sbr.rel (%p24) target = $region8
    $region5: #{tpu_custom_call.1} parent=1 // loop_body
      %s28 = ssub.s32 %s23, 1
      %s29 = ssub.s32 %s23, 2
      %s36 = sadd.s32 1, %s31
      %p37 = scmp.ge.s32.totalorder %s36, 6
      %s38 = scalar_select %p37, 0, %s36
      %s39 = sadd.s32 1, %s30
      %s40 = scalar_select %p37, %s39, %s30
      %p41 = scmp.ge.s32.totalorder %s40, 2
      %s42 = scalar_select %p41, 0, %s40
      %s43 = ssub.s32 %s30, %s42
      %p44 = scmp.eq.s32.totalorder %s43, 0
      %s46 = sadd.s32 %s45, 1
      %s47 = scalar_select %p44, %s45, %s46
      %p50 = pneg %p44
      %p51 = scmp.eq.s32.totalorder %s23, 11
      %p52 = por %p50, %p51
      %p53 = scmp.ne.s32.totalorder %s45, %s48
      %p54 = scmp.eq.s32.totalorder %s23, 0
      %p55 = por %p53, %p54
      %p56 = scmp.ne.s32.totalorder %s45, %s48
      %p57 = scmp.eq.s32.totalorder %s28, 11
      %p58 = por %p56, %p57
      %p59 = scmp.ne.s32.totalorder %s48, %s49
      %p60 = scmp.eq.s32.totalorder %s28, 0
      %p61 = por %p59, %p60
      %p62 = scmp.ne.s32.totalorder %s48, %s49
      %p63 = scmp.eq.s32.totalorder %s29, 11
      %p64 = por %p62, %p63
      %p66 = scmp.ne.s32.totalorder %s49, %s65
      %p67 = scmp.eq.s32.totalorder %s29, 0
      %p68 = por %p66, %p67
      %s69 = ssub.s32 %s30, %s42
      %p70 = scmp.eq.s32.totalorder %s69, 0
      %s72 = sadd.s32 %s71, 1
      %s73 = scalar_select %p70, %s71, %s72
      %p76 = pneg %p70
      %p77 = scmp.eq.s32.totalorder %s23, 11
      %p78 = por %p76, %p77
      %p79 = scmp.ne.s32.totalorder %s71, %s74
      %p80 = scmp.eq.s32.totalorder %s23, 0
      %p81 = por %p79, %p80
      %p82 = scmp.ne.s32.totalorder %s71, %s74
      %p83 = scmp.eq.s32.totalorder %s28, 11
      %p84 = por %p82, %p83
      %p85 = scmp.ne.s32.totalorder %s74, %s75
      %p86 = scmp.eq.s32.totalorder %s28, 0
      %p87 = por %p85, %p86
      %p88 = scmp.ne.s32.totalorder %s74, %s75
      %p89 = scmp.eq.s32.totalorder %s29, 11
      %p90 = por %p88, %p89
      %p92 = scmp.ne.s32.totalorder %s75, %s91
      %p93 = scmp.eq.s32.totalorder %s29, 0
      %p94 = por %p92, %p93
      %s95 = ssub.s32 %s31, %s38
      %p96 = scmp.eq.s32.totalorder %s95, 0
      %s98 = sadd.s32 %s97, 1
      %s99 = scalar_select %p96, %s97, %s98
      %p102 = pneg %p96
      %p103 = scmp.eq.s32.totalorder %s23, 11
      %p104 = por %p102, %p103
      %p105 = scmp.ne.s32.totalorder %s97, %s100
      %p106 = scmp.eq.s32.totalorder %s23, 0
      %p107 = por %p105, %p106
      %p108 = scmp.ne.s32.totalorder %s97, %s100
      %p109 = scmp.eq.s32.totalorder %s28, 11
      %p110 = por %p108, %p109
      %p111 = scmp.ne.s32.totalorder %s100, %s101
      %p112 = scmp.eq.s32.totalorder %s28, 0
      %p113 = por %p111, %p112
      %p114 = scmp.ne.s32.totalorder %s100, %s101
      %p115 = scmp.eq.s32.totalorder %s29, 11
      %p116 = por %p114, %p115
      %p118 = scmp.ne.s32.totalorder %s101, %s117
      %p119 = scmp.eq.s32.totalorder %s29, 0
      %p120 = por %p118, %p119
      %s121 = ssub.s32 %s31, %s38
      %p122 = scmp.eq.s32.totalorder %s121, 0
      %s124 = sadd.s32 %s123, 1
      %s125 = scalar_select %p122, %s123, %s124
      %p128 = pneg %p122
      %p129 = scmp.eq.s32.totalorder %s23, 11
      %p130 = por %p128, %p129
      %p131 = scmp.ne.s32.totalorder %s123, %s126
      %p132 = scmp.eq.s32.totalorder %s23, 0
      %p133 = por %p131, %p132
      %p134 = scmp.ne.s32.totalorder %s123, %s126
      %p135 = scmp.eq.s32.totalorder %s28, 11
      %p136 = por %p134, %p135
      %p137 = scmp.ne.s32.totalorder %s126, %s127
      %p138 = scmp.eq.s32.totalorder %s28, 0
      %p139 = por %p137, %p138
      %p140 = scmp.ne.s32.totalorder %s126, %s127
      %p141 = scmp.eq.s32.totalorder %s29, 11
      %p142 = por %p140, %p141
      %p144 = scmp.ne.s32.totalorder %s127, %s143
      %p145 = scmp.eq.s32.totalorder %s29, 0
      %p146 = por %p144, %p145
      %s147 = ssub.s32 %s31, %s38
      %p148 = scmp.eq.s32.totalorder %s147, 0
      %s150 = sadd.s32 %s149, 1
      %s151 = scalar_select %p148, %s149, %s150
      %p154 = pneg %p148
      %p155 = scmp.eq.s32.totalorder %s23, 11
      %p156 = por %p154, %p155
      %p157 = scmp.ne.s32.totalorder %s149, %s152
      %p158 = scmp.eq.s32.totalorder %s23, 0
      %p159 = por %p157, %p158
      %p160 = scmp.ne.s32.totalorder %s149, %s152
      %p161 = scmp.eq.s32.totalorder %s28, 11
      %p162 = por %p160, %p161
      %p163 = scmp.ne.s32.totalorder %s152, %s153
      %p164 = scmp.eq.s32.totalorder %s28, 0
      %p165 = por %p163, %p164
      %p166 = scmp.ne.s32.totalorder %s152, %s153
      %p167 = scmp.eq.s32.totalorder %s29, 11
      %p168 = por %p166, %p167
      %p170 = scmp.ne.s32.totalorder %s153, %s169
      %p171 = scmp.eq.s32.totalorder %s29, 0
      %p172 = por %p170, %p171
      %s173 = ssub.s32 %s31, %s38
      %p174 = scmp.eq.s32.totalorder %s173, 0
      %s176 = sadd.s32 %s175, 1
      %s177 = scalar_select %p174, %s175, %s176
      %p180 = pneg %p174
      %p181 = scmp.eq.s32.totalorder %s23, 11
      %p182 = por %p180, %p181
      %p183 = scmp.ne.s32.totalorder %s175, %s178
      %p184 = scmp.eq.s32.totalorder %s23, 0
      %p185 = por %p183, %p184
      %p186 = scmp.ne.s32.totalorder %s175, %s178
      %p187 = scmp.eq.s32.totalorder %s28, 11
      %p188 = por %p186, %p187
      %p189 = scmp.ne.s32.totalorder %s178, %s179
      %p190 = scmp.eq.s32.totalorder %s28, 0
      %p191 = por %p189, %p190
      %p192 = scmp.ne.s32.totalorder %s178, %s179
      %p193 = scmp.eq.s32.totalorder %s29, 11
      %p194 = por %p192, %p193
      %p196 = scmp.ne.s32.totalorder %s179, %s195
      %p197 = scmp.eq.s32.totalorder %s29, 0
      %p198 = por %p196, %p197
      %s199 = ssub.s32 %s31, %s38
      %p200 = scmp.eq.s32.totalorder %s199, 0
      %s202 = sadd.s32 %s201, 1
      %s203 = scalar_select %p200, %s201, %s202
      %p206 = pneg %p200
      %p207 = scmp.eq.s32.totalorder %s23, 11
      %p208 = por %p206, %p207
      %p209 = scmp.ne.s32.totalorder %s201, %s204
      %p210 = scmp.eq.s32.totalorder %s23, 0
      %p211 = por %p209, %p210
      %p212 = scmp.ne.s32.totalorder %s201, %s204
      %p213 = scmp.eq.s32.totalorder %s28, 11
      %p214 = por %p212, %p213
      %p215 = scmp.ne.s32.totalorder %s204, %s205
      %p216 = scmp.eq.s32.totalorder %s28, 0
      %p217 = por %p215, %p216
      %p218 = scmp.ne.s32.totalorder %s204, %s205
      %p219 = scmp.eq.s32.totalorder %s29, 11
      %p220 = por %p218, %p219
      %p222 = scmp.ne.s32.totalorder %s205, %s221
      %p223 = scmp.eq.s32.totalorder %s29, 0
      %p224 = por %p222, %p223
      %s225 = ssub.s32 %s31, %s38
      %p226 = scmp.eq.s32.totalorder %s225, 0
      %s228 = sadd.s32 %s227, 1
      %s229 = scalar_select %p226, %s227, %s228
      %p232 = pneg %p226
      %p233 = scmp.eq.s32.totalorder %s23, 11
      %p234 = por %p232, %p233
      %p235 = scmp.ne.s32.totalorder %s227, %s230
      %p236 = scmp.eq.s32.totalorder %s23, 0
      %p237 = por %p235, %p236
      %p238 = scmp.ne.s32.totalorder %s227, %s230
      %p239 = scmp.eq.s32.totalorder %s28, 11
      %p240 = por %p238, %p239
      %p241 = scmp.ne.s32.totalorder %s230, %s231
      %p242 = scmp.eq.s32.totalorder %s28, 0
      %p243 = por %p241, %p242
      %p244 = scmp.ne.s32.totalorder %s230, %s231
      %p245 = scmp.eq.s32.totalorder %s29, 11
      %p246 = por %p244, %p245
      %p248 = scmp.ne.s32.totalorder %s231, %s247
      %p249 = scmp.eq.s32.totalorder %s29, 0
      %p250 = por %p248, %p249
      %s251 = ssub.s32 %s31, %s38
      %p252 = scmp.eq.s32.totalorder %s251, 0
      %s254 = sadd.s32 %s253, 1
      %s255 = scalar_select %p252, %s253, %s254
      %p258 = pneg %p252
      %p259 = scmp.eq.s32.totalorder %s23, 11
      %p260 = por %p258, %p259
      %p261 = scmp.ne.s32.totalorder %s253, %s256
      %p262 = scmp.eq.s32.totalorder %s23, 0
      %p263 = por %p261, %p262
      %p264 = scmp.ne.s32.totalorder %s253, %s256
      %p265 = scmp.eq.s32.totalorder %s28, 11
      %p266 = por %p264, %p265
      %p267 = scmp.ne.s32.totalorder %s256, %s257
      %p268 = scmp.eq.s32.totalorder %s28, 0
      %p269 = por %p267, %p268
      %p270 = scmp.ne.s32.totalorder %s256, %s257
      %p271 = scmp.eq.s32.totalorder %s29, 11
      %p272 = por %p270, %p271
      %p274 = scmp.ne.s32.totalorder %s257, %s273
      %p275 = scmp.eq.s32.totalorder %s29, 0
      %p276 = por %p274, %p275
      %s277 = ssub.s32 %s31, %s38
      %p278 = scmp.eq.s32.totalorder %s277, 0
      %s280 = sadd.s32 %s279, 1
      %s281 = scalar_select %p278, %s279, %s280
      %p284 = pneg %p278
      %p285 = scmp.eq.s32.totalorder %s23, 11
      %p286 = por %p284, %p285
      %p287 = scmp.ne.s32.totalorder %s279, %s282
      %p288 = scmp.eq.s32.totalorder %s23, 0
      %p289 = por %p287, %p288
      %p290 = scmp.ne.s32.totalorder %s279, %s282
      %p291 = scmp.eq.s32.totalorder %s28, 11
      %p292 = por %p290, %p291
      %p293 = scmp.ne.s32.totalorder %s282, %s283
      %p294 = scmp.eq.s32.totalorder %s28, 0
      %p295 = por %p293, %p294
      %p296 = scmp.ne.s32.totalorder %s282, %s283
      %p297 = scmp.eq.s32.totalorder %s29, 11
      %p298 = por %p296, %p297
      %p300 = scmp.ne.s32.totalorder %s283, %s299
      %p301 = scmp.eq.s32.totalorder %s29, 0
      %p302 = por %p300, %p301
      %s303 = ssub.s32 %s31, %s38
      %p304 = scmp.eq.s32.totalorder %s303, 0
      %s306 = sadd.s32 %s305, 1
      %s307 = scalar_select %p304, %s305, %s306
      %p310 = pneg %p304
      %p311 = scmp.eq.s32.totalorder %s23, 11
      %p312 = por %p310, %p311
      %p313 = scmp.ne.s32.totalorder %s305, %s308
      %p314 = scmp.eq.s32.totalorder %s23, 0
      %p315 = por %p313, %p314
      %p316 = scmp.ne.s32.totalorder %s305, %s308
      %p317 = scmp.eq.s32.totalorder %s28, 11
      %p318 = por %p316, %p317
      %p319 = scmp.ne.s32.totalorder %s308, %s309
      %p320 = scmp.eq.s32.totalorder %s28, 0
      %p321 = por %p319, %p320
      %p322 = scmp.ne.s32.totalorder %s308, %s309
      %p323 = scmp.eq.s32.totalorder %s29, 11
      %p324 = por %p322, %p323
      %p326 = scmp.ne.s32.totalorder %s309, %s325
      %p327 = scmp.eq.s32.totalorder %s29, 0
      %p328 = por %p326, %p327
      %s329 = ssub.s32 %s31, %s38
      %p330 = scmp.eq.s32.totalorder %s329, 0
      %s332 = sadd.s32 %s331, 1
      %s333 = scalar_select %p330, %s331, %s332
      %p336 = pneg %p330
      %p337 = scmp.eq.s32.totalorder %s23, 11
      %p338 = por %p336, %p337
      %p339 = scmp.ne.s32.totalorder %s331, %s334
      %p340 = scmp.eq.s32.totalorder %s23, 0
      %p341 = por %p339, %p340
      %p342 = scmp.ne.s32.totalorder %s331, %s334
      %p343 = scmp.eq.s32.totalorder %s28, 11
      %p344 = por %p342, %p343
      %p345 = scmp.ne.s32.totalorder %s334, %s335
      %p346 = scmp.eq.s32.totalorder %s28, 0
      %p347 = por %p345, %p346
      %p348 = scmp.ne.s32.totalorder %s334, %s335
      %p349 = scmp.eq.s32.totalorder %s29, 11
      %p350 = por %p348, %p349
      %p352 = scmp.ne.s32.totalorder %s335, %s351
      %p353 = scmp.eq.s32.totalorder %s29, 0
      %p354 = por %p352, %p353
      %s355 = ssub.s32 %s31, %s38
      %p356 = scmp.eq.s32.totalorder %s355, 0
      %s358 = sadd.s32 %s357, 1
      %s359 = scalar_select %p356, %s357, %s358
      %p362 = pneg %p356
      %p363 = scmp.eq.s32.totalorder %s23, 11
      %p364 = por %p362, %p363
      %p365 = scmp.ne.s32.totalorder %s357, %s360
      %p366 = scmp.eq.s32.totalorder %s23, 0
      %p367 = por %p365, %p366
      %p368 = scmp.ne.s32.totalorder %s357, %s360
      %p369 = scmp.eq.s32.totalorder %s28, 11
      %p370 = por %p368, %p369
      %p371 = scmp.ne.s32.totalorder %s360, %s361
      %p372 = scmp.eq.s32.totalorder %s28, 0
      %p373 = por %p371, %p372
      %p374 = scmp.ne.s32.totalorder %s360, %s361
      %p375 = scmp.eq.s32.totalorder %s29, 11
      %p376 = por %p374, %p375
      %p378 = scmp.ne.s32.totalorder %s361, %s377
      %p379 = scmp.eq.s32.totalorder %s29, 0
      %p380 = por %p378, %p379
      %s381 = ssub.s32 %s31, %s38
      %p382 = scmp.eq.s32.totalorder %s381, 0
      %s384 = sadd.s32 %s383, 1
      %s385 = scalar_select %p382, %s383, %s384
      %p388 = pneg %p382
      %p389 = scmp.eq.s32.totalorder %s23, 11
      %p390 = por %p388, %p389
      %p391 = scmp.ne.s32.totalorder %s383, %s386
      %p392 = scmp.eq.s32.totalorder %s23, 0
      %p393 = por %p391, %p392
      %p394 = scmp.ne.s32.totalorder %s383, %s386
      %p395 = scmp.eq.s32.totalorder %s28, 11
      %p396 = por %p394, %p395
      %p397 = scmp.ne.s32.totalorder %s386, %s387
      %p398 = scmp.eq.s32.totalorder %s28, 0
      %p399 = por %p397, %p398
      %p400 = scmp.ne.s32.totalorder %s386, %s387
      %p401 = scmp.eq.s32.totalorder %s29, 11
      %p402 = por %p400, %p401
      %p404 = scmp.ne.s32.totalorder %s387, %s403
      %p405 = scmp.eq.s32.totalorder %s29, 0
      %p406 = por %p404, %p405
      %s407 = ssub.s32 %s30, %s42
      %p408 = scmp.eq.s32.totalorder %s407, 0
      %s410 = sadd.s32 %s409, 1
      %s411 = scalar_select %p408, %s409, %s410
      %p414 = pneg %p408
      %p415 = scmp.eq.s32.totalorder %s23, 11
      %p416 = por %p414, %p415
      %p417 = scmp.ne.s32.totalorder %s409, %s412
      %p418 = scmp.eq.s32.totalorder %s23, 0
      %p419 = por %p417, %p418
      %p420 = scmp.ne.s32.totalorder %s409, %s412
      %p421 = scmp.eq.s32.totalorder %s28, 11
      %p422 = por %p420, %p421
      %p423 = scmp.ne.s32.totalorder %s412, %s413
      %p424 = scmp.eq.s32.totalorder %s28, 0
      %p425 = por %p423, %p424
      %p426 = scmp.ne.s32.totalorder %s412, %s413
      %p427 = scmp.eq.s32.totalorder %s29, 11
      %p428 = por %p426, %p427
      %p430 = scmp.ne.s32.totalorder %s413, %s429
      %p431 = scmp.eq.s32.totalorder %s29, 0
      %p432 = por %p430, %p431
      %p433 = scmp.le.s32.totalorder 1, %s23
      %p434 = scmp.lt.s32.totalorder %s23, 13
      %p435 = pnand %p433, %p434
      %p436 = pneg %p435
      // Predicated region
      $region9: #{tpu_custom_call.1} parent=5 // pred_check
        _
      $region10: #{tpu_custom_call.1} parent=5 // pred_check_branch
        %438 = sbr.rel (%p435) target = $region12
      $region11: #{tpu_custom_call.1} parent=5 // pred_region
        %s439 = ssub.s32 %s23, 1
      $region12: #{tpu_custom_call.1} parent=5 // pred_fallthru
        _
      %p440 = scmp.lt.s32.totalorder %s23, 12
      // Predicated region
      $region13: #{tpu_custom_call.1} parent=5 // pred_check
        %p441 = pneg %p440
      $region14: #{tpu_custom_call.1} parent=5 // pred_check_branch
        %443 = sbr.rel (%p441) target = $region16
      $region15: #{tpu_custom_call.1} parent=5 // pred_region
        // Predicated region
        $region17: #{tpu_custom_call.1} parent=15 // pred_check
          %p444 = pneg %p55
        $region18: #{tpu_custom_call.1} parent=15 // pred_check_branch
          %446 = sbr.rel (%p444) target = $region20
        $region19: #{tpu_custom_call.1} parent=15 // pred_region
          %p447 = scmp.lt.s32.totalorder %s30, 1
          %s448 = scalar_select %p447, %s30, 1
          %s449 = smul.addr %s448, 8
          %s450 = scalar_lea.vmem %s0, %s449
        $region20: #{tpu_custom_call.1} parent=15 // pred_fallthru
          _
        // Predicated region
        $region21: #{tpu_custom_call.1} parent=15 // pred_check
          %p451 = pneg %p81
        $region22: #{tpu_custom_call.1} parent=15 // pred_check_branch
          %453 = sbr.rel (%p451) target = $region24
        $region23: #{tpu_custom_call.1} parent=15 // pred_region
          %p454 = scmp.lt.s32.totalorder %s30, 1
          %s455 = scalar_select %p454, %s30, 1
          %s456 = scalar_lea.vmem %s1, %s455
        $region24: #{tpu_custom_call.1} parent=15 // pred_fallthru
          _
        // Predicated region
        $region25: #{tpu_custom_call.1} parent=15 // pred_check
          %p457 = pneg %p107
        $region26: #{tpu_custom_call.1} parent=15 // pred_check_branch
          %459 = sbr.rel (%p457) target = $region28
        $region27: #{tpu_custom_call.1} parent=15 // pred_region
          %p460 = scmp.lt.s32.totalorder %s31, 5
          %s461 = scalar_select %p460, %s31, 5
          %s462 = smul.addr %s461, 4
          %s463 = smul.addr %s462, 4
          %s464 = scalar_lea.vmem %s2, %s463
        $region28: #{tpu_custom_call.1} parent=15 // pred_fallthru
          _
        // Predicated region
        $region29: #{tpu_custom_call.1} parent=15 // pred_check
          %p465 = pneg %p133
        $region30: #{tpu_custom_call.1} parent=15 // pred_check_branch
          %467 = sbr.rel (%p465) target = $region32
        $region31: #{tpu_custom_call.1} parent=15 // pred_region
          %p468 = scmp.lt.s32.totalorder %s31, 5
          %s469 = scalar_select %p468, %s31, 5
          %s470 = scalar_lea.vmem %s3, %s469
        $region32: #{tpu_custom_call.1} parent=15 // pred_fallthru
          _
        // Predicated region
        $region33: #{tpu_custom_call.1} parent=15 // pred_check
          %p471 = pneg %p159
        $region34: #{tpu_custom_call.1} parent=15 // pred_check_branch
          %473 = sbr.rel (%p471) target = $region36
        $region35: #{tpu_custom_call.1} parent=15 // pred_region
          %p474 = scmp.lt.s32.totalorder %s31, 5
          %s475 = scalar_select %p474, %s31, 5
          %s476 = smul.addr %s475, 4
          %s477 = smul.addr %s476, 4
          %s478 = scalar_lea.vmem %s4, %s477
        $region36: #{tpu_custom_call.1} parent=15 // pred_fallthru
          _
        // Predicated region
        $region37: #{tpu_custom_call.1} parent=15 // pred_check
          %p479 = pneg %p185
        $region38: #{tpu_custom_call.1} parent=15 // pred_check_branch
          %481 = sbr.rel (%p479) target = $region40
        $region39: #{tpu_custom_call.1} parent=15 // pred_region
          %p482 = scmp.lt.s32.totalorder %s31, 5
          %s483 = scalar_select %p482, %s31, 5
          %s484 = scalar_lea.vmem %s5, %s483
        $region40: #{tpu_custom_call.1} parent=15 // pred_fallthru
          _
        // Predicated region
        $region41: #{tpu_custom_call.1} parent=15 // pred_check
          %p485 = pneg %p211
        $region42: #{tpu_custom_call.1} parent=15 // pred_check_branch
          %487 = sbr.rel (%p485) target = $region44
        $region43: #{tpu_custom_call.1} parent=15 // pred_region
          %p488 = scmp.lt.s32.totalorder %s31, 5
          %s489 = scalar_select %p488, %s31, 5
          %s490 = scalar_lea.vmem %s6, %s489
        $region44: #{tpu_custom_call.1} parent=15 // pred_fallthru
          _
        // Predicated region
        $region45: #{tpu_custom_call.1} parent=15 // pred_check
          %p491 = pneg %p237
        $region46: #{tpu_custom_call.1} parent=15 // pred_check_branch
          %493 = sbr.rel (%p491) target = $region48
        $region47: #{tpu_custom_call.1} parent=15 // pred_region
          %p494 = scmp.lt.s32.totalorder %s31, 5
          %s495 = scalar_select %p494, %s31, 5
          %s496 = scalar_lea.vmem %s7, %s495
        $region48: #{tpu_custom_call.1} parent=15 // pred_fallthru
          _
        // Predicated region
        $region49: #{tpu_custom_call.1} parent=15 // pred_check
          %p497 = pneg %p263
        $region50: #{tpu_custom_call.1} parent=15 // pred_check_branch
          %499 = sbr.rel (%p497) target = $region52
        $region51: #{tpu_custom_call.1} parent=15 // pred_region
          %p500 = scmp.lt.s32.totalorder %s31, 5
          %s501 = scalar_select %p500, %s31, 5
          %s502 = smul.addr %s501, 4
          %s503 = smul.addr %s502, 4
          %s504 = scalar_lea.vmem %s8, %s503
        $region52: #{tpu_custom_call.1} parent=15 // pred_fallthru
          _
        // Predicated region
        $region53: #{tpu_custom_call.1} parent=15 // pred_check
          %p505 = pneg %p289
        $region54: #{tpu_custom_call.1} parent=15 // pred_check_branch
          %507 = sbr.rel (%p505) target = $region56
        $region55: #{tpu_custom_call.1} parent=15 // pred_region
          %p508 = scmp.lt.s32.totalorder %s31, 5
          %s509 = scalar_select %p508, %s31, 5
          %s510 = scalar_lea.vmem %s9, %s509
        $region56: #{tpu_custom_call.1} parent=15 // pred_fallthru
          _
        // Predicated region
        $region57: #{tpu_custom_call.1} parent=15 // pred_check
          %p511 = pneg %p315
        $region58: #{tpu_custom_call.1} parent=15 // pred_check_branch
          %513 = sbr.rel (%p511) target = $region60
        $region59: #{tpu_custom_call.1} parent=15 // pred_region
          %p514 = scmp.lt.s32.totalorder %s31, 5
          %s515 = scalar_select %p514, %s31, 5
          %s516 = smul.addr %s515, 16
          %s517 = smul.addr %s516, 4
          %s518 = scalar_lea.vmem %s10, %s517
        $region60: #{tpu_custom_call.1} parent=15 // pred_fallthru
          _
        // Predicated region
        $region61: #{tpu_custom_call.1} parent=15 // pred_check
          %p519 = pneg %p341
        $region62: #{tpu_custom_call.1} parent=15 // pred_check_branch
          %521 = sbr.rel (%p519) target = $region64
        $region63: #{tpu_custom_call.1} parent=15 // pred_region
          %p522 = scmp.lt.s32.totalorder %s31, 5
          %s523 = scalar_select %p522, %s31, 5
          %s524 = scalar_lea.vmem %s11, %s523
        $region64: #{tpu_custom_call.1} parent=15 // pred_fallthru
          _
        // Predicated region
        $region65: #{tpu_custom_call.1} parent=15 // pred_check
          %p525 = pneg %p367
        $region66: #{tpu_custom_call.1} parent=15 // pred_check_branch
          %527 = sbr.rel (%p525) target = $region68
        $region67: #{tpu_custom_call.1} parent=15 // pred_region
          %p528 = scmp.lt.s32.totalorder %s31, 5
          %s529 = scalar_select %p528, %s31, 5
          %s530 = scalar_lea.vmem %s12, %s529
        $region68: #{tpu_custom_call.1} parent=15 // pred_fallthru
          _
        // Predicated region
        $region69: #{tpu_custom_call.1} parent=15 // pred_check
          %p531 = pneg %p393
        $region70: #{tpu_custom_call.1} parent=15 // pred_check_branch
          %533 = sbr.rel (%p531) target = $region72
        $region71: #{tpu_custom_call.1} parent=15 // pred_region
          %p534 = scmp.lt.s32.totalorder %s31, 5
          %s535 = scalar_select %p534, %s31, 5
          %s536 = scalar_lea.vmem %s13, %s535
        $region72: #{tpu_custom_call.1} parent=15 // pred_fallthru
          _
      $region16: #{tpu_custom_call.1} parent=5 // pred_fallthru
        _
      %p537 = scmp.le.s32.totalorder 1, %s23
      %p538 = scmp.lt.s32.totalorder %s23, 13
      %p539 = pnand %p537, %p538
      %p540 = pneg %p539
      // Predicated region
      $region73: #{tpu_custom_call.1} parent=5 // pred_check
        _
      $region74: #{tpu_custom_call.1} parent=5 // pred_check_branch
        %542 = sbr.rel (%p539) target = $region76
      $region75: #{tpu_custom_call.1} parent=5 // pred_region
        %s543 = ssub.s32 %s23, 1
        %p544 = scmp.lt.s32.totalorder %s32, 1
        %s545 = scalar_select %p544, %s32, 1
        %s546 = smul.addr %s545, 8
        %s547 = scalar_lea.vmem %s0, %s546
        %p548 = pneg %p61
        %p549 = pneg %p58
        %p550 = scmp.lt.s32.totalorder %s32, 1
        %s551 = scalar_select %p550, %s32, 1
        %s552 = scalar_lea.vmem %s1, %s551
        %p553 = pneg %p87
        %p554 = pneg %p84
        %p555 = scmp.lt.s32.totalorder %s33, 5
        %s556 = scalar_select %p555, %s33, 5
        %s557 = smul.addr %s556, 4
        %s558 = smul.addr %s557, 4
        %s559 = scalar_lea.vmem %s2, %s558
        %p560 = pneg %p113
        %p561 = pneg %p110
        %p562 = scmp.lt.s32.totalorder %s33, 5
        %s563 = scalar_select %p562, %s33, 5
        %s564 = scalar_lea.vmem %s3, %s563
        %p565 = pneg %p139
        %p566 = pneg %p136
        %p567 = scmp.lt.s32.totalorder %s33, 5
        %s568 = scalar_select %p567, %s33, 5
        %s569 = smul.addr %s568, 4
        %s570 = smul.addr %s569, 4
        %s571 = scalar_lea.vmem %s4, %s570
        %p572 = pneg %p165
        %p573 = pneg %p162
        %p574 = scmp.lt.s32.totalorder %s33, 5
        %s575 = scalar_select %p574, %s33, 5
        %s576 = scalar_lea.vmem %s5, %s575
        %p577 = pneg %p191
        %p578 = pneg %p188
        %p579 = scmp.lt.s32.totalorder %s33, 5
        %s580 = scalar_select %p579, %s33, 5
        %s581 = scalar_lea.vmem %s6, %s580
        %p582 = pneg %p217
        %p583 = pneg %p214
        %p584 = scmp.lt.s32.totalorder %s33, 5
        %s585 = scalar_select %p584, %s33, 5
        %s586 = scalar_lea.vmem %s7, %s585
        %p587 = pneg %p243
        %p588 = pneg %p240
        %p589 = scmp.lt.s32.totalorder %s33, 5
        %s590 = scalar_select %p589, %s33, 5
        %s591 = smul.addr %s590, 4
        %s592 = smul.addr %s591, 4
        %s593 = scalar_lea.vmem %s8, %s592
        %p594 = pneg %p269
        %p595 = pneg %p266
        %p596 = scmp.lt.s32.totalorder %s33, 5
        %s597 = scalar_select %p596, %s33, 5
        %s598 = scalar_lea.vmem %s9, %s597
        %p599 = pneg %p295
        %p600 = pneg %p292
        %p601 = scmp.lt.s32.totalorder %s33, 5
        %s602 = scalar_select %p601, %s33, 5
        %s603 = smul.addr %s602, 16
        %s604 = smul.addr %s603, 4
        %s605 = scalar_lea.vmem %s10, %s604
        %p606 = pneg %p321
        %p607 = pneg %p318
        %p608 = scmp.lt.s32.totalorder %s33, 5
        %s609 = scalar_select %p608, %s33, 5
        %s610 = scalar_lea.vmem %s11, %s609
        %p611 = pneg %p347
        %p612 = pneg %p344
        %p613 = scmp.lt.s32.totalorder %s33, 5
        %s614 = scalar_select %p613, %s33, 5
        %s615 = scalar_lea.vmem %s12, %s614
        %p616 = pneg %p373
        %p617 = pneg %p370
        %p618 = scmp.lt.s32.totalorder %s33, 5
        %s619 = scalar_select %p618, %s33, 5
        %s620 = scalar_lea.vmem %s13, %s619
        %p621 = pneg %p399
        %p622 = pneg %p396
        %p623 = pneg %p425
        %p624 = pneg %p422
        %s625 = sand.u32 %s412, 1
        %s626 = scalar_lea.sflag [#allocation4], %s625
        %s627 = sand.u32 %s412, 1
        %s628 = smul.addr %s627, 8
        %s629 = scalar_lea.vmem [#allocation3], %s628
        %p630 = scmp.lt.s32.totalorder %s32, 1
        %s631 = scalar_select %p630, %s32, 1
        %s632 = smul.addr %s631, 8
        %s633 = scalar_lea.vmem %s0, %s632
        %p634 = scmp.lt.s32.totalorder %s32, 1
        %s635 = scalar_select %p634, %s32, 1
        %s636 = scalar_lea.vmem %s1, %s635
        %p637 = scmp.lt.s32.totalorder %s33, 5
        %s638 = scalar_select %p637, %s33, 5
        %s639 = smul.addr %s638, 4
        %s640 = smul.addr %s639, 4
        %s641 = scalar_lea.vmem %s2, %s640
        %p642 = scmp.lt.s32.totalorder %s33, 5
        %s643 = scalar_select %p642, %s33, 5
        %s644 = scalar_lea.vmem %s3, %s643
        %p645 = scmp.lt.s32.totalorder %s33, 5
        %s646 = scalar_select %p645, %s33, 5
        %s647 = smul.addr %s646, 4
        %s648 = smul.addr %s647, 4
        %s649 = scalar_lea.vmem %s4, %s648
        %p650 = scmp.lt.s32.totalorder %s33, 5
        %s651 = scalar_select %p650, %s33, 5
        %s652 = scalar_lea.vmem %s5, %s651
        %p653 = scmp.lt.s32.totalorder %s33, 5
        %s654 = scalar_select %p653, %s33, 5
        %s655 = scalar_lea.vmem %s6, %s654
        %p656 = scmp.lt.s32.totalorder %s33, 5
        %s657 = scalar_select %p656, %s33, 5
        %s658 = scalar_lea.vmem %s7, %s657
        %p659 = scmp.lt.s32.totalorder %s33, 5
        %s660 = scalar_select %p659, %s33, 5
        %s661 = smul.addr %s660, 4
        %s662 = smul.addr %s661, 4
        %s663 = scalar_lea.vmem %s8, %s662
        %p664 = scmp.lt.s32.totalorder %s33, 5
        %s665 = scalar_select %p664, %s33, 5
        %s666 = scalar_lea.vmem %s9, %s665
        %p667 = scmp.lt.s32.totalorder %s33, 5
        %s668 = scalar_select %p667, %s33, 5
        %s669 = smul.addr %s668, 16
        %s670 = smul.addr %s669, 4
        %s671 = scalar_lea.vmem %s10, %s670
        %p672 = scmp.lt.s32.totalorder %s33, 5
        %s673 = scalar_select %p672, %s33, 5
        %s674 = scalar_lea.vmem %s11, %s673
        %p675 = scmp.lt.s32.totalorder %s33, 5
        %s676 = scalar_select %p675, %s33, 5
        %s677 = scalar_lea.vmem %s12, %s676
        %p678 = scmp.lt.s32.totalorder %s33, 5
        %s679 = scalar_select %p678, %s33, 5
        %s680 = scalar_lea.vmem %s13, %s679
        %p682 = scmp.eq.s32.totalorder %s33, 0
        // Predicated region
        $region77: #{tpu_custom_call.1} parent=75 // pred_check
          %p683 = pneg %p682
        $region78: #{tpu_custom_call.1} parent=75 // pred_check_branch
          %685 = sbr.rel (%p683) target = $region80
        $region79: #{tpu_custom_call.1} parent=75 // pred_region
          %v686 = vld [vmem:[%s633] sm:$0xff]
          %vm687 = vcmask 261120
          %688 = vst.msk [vmem:[#allocation2] sm:$0xff] %vm687, %v686
        $region80: #{tpu_custom_call.1} parent=75 // pred_fallthru
          _
        %v689 = vld [vmem:[#allocation2] sm:$0xff]
        %v690 = vld [vmem:[%s636] sm:$0x1]
        %v691 = vpack.c.bf16 %v689, %v689
        %v692 = vld [vmem:[%s641] sm:$0xf]
        %v693 = vld [vmem:[%s641 + $0x4] sm:$0xf]
        %v694 = vld [vmem:[%s641 + $0x8] sm:$0xf]
        %v695 = vld [vmem:[%s641 + $0xc] sm:$0xf]
        %v696 = vld [vmem:[%s644] sm:$0x1]
        %v698 = vlaneseq
        %v699 = vshrl.u32 %v698, 7
        %v700 = vsub.s32 0, %v699
        %v701 = vrot.slane %v696, %v700
        %v707 = vunpack.c.l.b16 %v692
        %v708 = vunpack.c.l.b16 %v693
        %v709 = vunpack.c.l.b16 %v694
        %v710 = vunpack.c.l.b16 %v695
        %v711 = vpack.c.b16 %v708, %v707
        %v712 = vpack.c.b16 %v710, %v709
        %vm715 = vcmask 261120
        %v717 = vsel %vm715, %v691, 0
        %719 = vmatprep.subr.bf16.mxu0 0
        %720 = vmatpush1.bf16.msra.mxu0 %v711
        %721 = vmatprep.subr.bf16.mxu0 0
        %722 = vmatpush1.bf16.msra.mxu0 %v712
        %723 = vmatprep.subr.bf16.mxu0 0
        %724 = vmatpush1.bf16.msra.mxu0 0
        %725 = vmatprep.subr.bf16.mxu0 0
        %726 = vmatpush1.bf16.msra.mxu0 0
        %727 = vmatprep.subr.bf16.mxu0 0
        %728 = vmatpush1.bf16.msra.mxu0 0
        %729 = vmatprep.subr.bf16.mxu0 0
        %730 = vmatpush1.bf16.msra.mxu0 0
        %731 = vmatprep.subr.bf16.mxu0 0
        %732 = vmatpush1.bf16.msra.mxu0 0
        %733 = vmatprep.subr.bf16.mxu0 0
        %734 = vmatpush1.bf16.msra.mxu0 0
        %735 = vmatprep.subr.bf16.mxu0 0
        %736 = vmatpush1.bf16.msra.mxu0 0
        %737 = vmatprep.subr.bf16.mxu0 0
        %738 = vmatpush1.bf16.msra.mxu0 0
        %739 = vmatprep.subr.bf16.mxu0 0
        %740 = vmatpush1.bf16.msra.mxu0 0
        %741 = vmatprep.subr.bf16.mxu0 0
        %742 = vmatpush1.bf16.msra.mxu0 0
        %743 = vmatprep.subr.bf16.mxu0 0
        %744 = vmatpush1.bf16.msra.mxu0 0
        %745 = vmatprep.subr.bf16.mxu0 0
        %746 = vmatpush1.bf16.msra.mxu0 0
        %747 = vmatprep.subr.bf16.mxu0 0
        %748 = vmatpush1.bf16.msra.mxu0 0
        %749 = vmatprep.subr.bf16.mxu0 0
        %750 = vmatpush1.bf16.msra.mxu0 0
        %751 = vmatprep.mubr.bf16.mxu0 0
        %752 = vmatmul.mubr.bf16.gmra.mrb[0].mxu0 %v717
        %v753 = vpop.f32.mrb[0].mxu0
        %v754 = vadd.f32 %v701, %v753
        %v755 = vpop.f32.mrb[0].mxu0
        %v756 = vpop.f32.mrb[0].mxu0
        %v757 = vpop.f32.mrb[0].mxu0
        %758 = vdwg.mxu0
        %v759 = vmul.f32 %v754, 0.35355338
        %v760 = vpack.c.bf16 %v759, %v759
        %v761 = vpack.c.bf16 %v754, %v754
        %v762 = vld [vmem:[%s649] sm:$0xf]
        %v763 = vld [vmem:[%s649 + $0x4] sm:$0xf]
        %v764 = vld [vmem:[%s649 + $0x8] sm:$0xf]
        %v765 = vld [vmem:[%s649 + $0xc] sm:$0xf]
        %v767 = vlaneseq
        %v768 = vshrl.u32 %v767, 7
        %v769 = vsub.s32 0, %v768
        %v770 = vrot.slane %v690, %v769
        %773 = vrot.lane.b32.xlu0 %v761, 96
        %v774 = vpop.permute.xlu0 %773
        %vm775 = vcmask 64512
        %v777 = vsel %vm775, %v760, 0
        %v780 = vsel %vm775, %v774, 0
        %782 = vmatprep.subr.bf16.mxu0 0
        %783 = vmatpush1.bf16.xpose.msra.mxu0 %v780
        %784 = vmatprep.subr.bf16.mxu0 0
        %785 = vmatpush1.bf16.xpose.msra.mxu0 0
        %786 = vmatprep.subr.bf16.mxu0 0
        %787 = vmatpush1.bf16.xpose.msra.mxu0 0
        %788 = vmatprep.subr.bf16.mxu0 0
        %789 = vmatpush1.bf16.xpose.msra.mxu0 0
        %790 = vmatprep.subr.bf16.mxu0 0
        %791 = vmatpush1.bf16.xpose.msra.mxu0 0
        %792 = vmatprep.subr.bf16.mxu0 0
        %793 = vmatpush1.bf16.xpose.msra.mxu0 0
        %794 = vmatprep.subr.bf16.mxu0 0
        %795 = vmatpush1.bf16.xpose.msra.mxu0 0
        %796 = vmatprep.subr.bf16.mxu0 0
        %797 = vmatpush1.bf16.xpose.msra.mxu0 0
        %798 = vmatprep.subr.bf16.mxu0 0
        %799 = vmatpush1.bf16.xpose.msra.mxu0 0
        %800 = vmatprep.subr.bf16.mxu0 0
        %801 = vmatpush1.bf16.xpose.msra.mxu0 0
        %802 = vmatprep.subr.bf16.mxu0 0
        %803 = vmatpush1.bf16.xpose.msra.mxu0 0
        %804 = vmatprep.subr.bf16.mxu0 0
        %805 = vmatpush1.bf16.xpose.msra.mxu0 0
        %806 = vmatprep.subr.bf16.mxu0 0
        %807 = vmatpush1.bf16.xpose.msra.mxu0 0
        %808 = vmatprep.subr.bf16.mxu0 0
        %809 = vmatpush1.bf16.xpose.msra.mxu0 0
        %810 = vmatprep.subr.bf16.mxu0 0
        %811 = vmatpush1.bf16.xpose.msra.mxu0 0
        %812 = vmatprep.subr.bf16.mxu0 0
        %813 = vmatpush1.bf16.xpose.msra.mxu0 0
        %814 = vmatprep.mubr.bf16.mxu0 0
        %815 = vmatmul.mubr.bf16.gmra.mrb[0].mxu0 %v777
        %v816 = vpop.f32.mrb[0].mxu0
        %v817 = vadd.f32 %v770, %v816
        %v818 = vpop.f32.mrb[0].mxu0
        %v819 = vpop.f32.mrb[0].mxu0
        %v820 = vpop.f32.mrb[0].mxu0
        %821 = vdwg.mxu0
        %v822 = vsel %vm775, %v817, -inf
        %823 = vmax.xlane.f32.xlu0 %v822
        %v824 = vpop.xlane.xlu0 %823
        %v825 = vsub.f32 %v817, %v824
        %v826 = vmul.f32 %v825, 1.442695
        %v827 = vpow.pop %v826
        %v828 = vsel %vm775, %v827, 0.0
        %829 = vadd.xlane.f32.xlu0 %v828
        %v830 = vpop.xlane.xlu0 %829
        %v831 = vrcp.pop %v830
        %v832 = vmul.f32 %v827, %v831
        %v833 = vpack.c.bf16 %v832, %v832
        %834 = vrot.lane.b32.xlu0 %v761, 64
        %v835 = vpop.permute.xlu0 %834
        %v837 = vsel %vm775, %v833, 0
        %vm839 = vcmask 1043456
        %v841 = vsel %vm839, %v835, 0
        %843 = vmatprep.subr.bf16.mxu0 0
        %844 = vmatpush1.bf16.msra.mxu0 %v841
        %845 = vmatprep.subr.bf16.mxu0 0
        %846 = vmatpush1.bf16.msra.mxu0 0
        %847 = vmatprep.subr.bf16.mxu0 0
        %848 = vmatpush1.bf16.msra.mxu0 0
        %849 = vmatprep.subr.bf16.mxu0 0
        %850 = vmatpush1.bf16.msra.mxu0 0
        %851 = vmatprep.subr.bf16.mxu0 0
        %852 = vmatpush1.bf16.msra.mxu0 0
        %853 = vmatprep.subr.bf16.mxu0 0
        %854 = vmatpush1.bf16.msra.mxu0 0
        %855 = vmatprep.subr.bf16.mxu0 0
        %856 = vmatpush1.bf16.msra.mxu0 0
        %857 = vmatprep.subr.bf16.mxu0 0
        %858 = vmatpush1.bf16.msra.mxu0 0
        %859 = vmatprep.subr.bf16.mxu0 0
        %860 = vmatpush1.bf16.msra.mxu0 0
        %861 = vmatprep.subr.bf16.mxu0 0
        %862 = vmatpush1.bf16.msra.mxu0 0
        %863 = vmatprep.subr.bf16.mxu0 0
        %864 = vmatpush1.bf16.msra.mxu0 0
        %865 = vmatprep.subr.bf16.mxu0 0
        %866 = vmatpush1.bf16.msra.mxu0 0
        %867 = vmatprep.subr.bf16.mxu0 0
        %868 = vmatpush1.bf16.msra.mxu0 0
        %869 = vmatprep.subr.bf16.mxu0 0
        %870 = vmatpush1.bf16.msra.mxu0 0
        %871 = vmatprep.subr.bf16.mxu0 0
        %872 = vmatpush1.bf16.msra.mxu0 0
        %873 = vmatprep.subr.bf16.mxu0 0
        %874 = vmatpush1.bf16.msra.mxu0 0
        %875 = vmatprep.mubr.bf16.mxu0 0
        %876 = vmatmul.mubr.bf16.gmra.mrb[0].mxu0 %v837
        %v877 = vpop.f32.mrb[0].mxu0
        %v878 = vadd.f32 0.0, %v877
        %v879 = vpop.f32.mrb[0].mxu0
        %v880 = vpop.f32.mrb[0].mxu0
        %v881 = vpop.f32.mrb[0].mxu0
        %882 = vdwg.mxu0
        %v883 = vpack.c.bf16 %v878, %v878
        %885 = vrot.lane.b32.xlu0 %v760, 120
        %v886 = vpop.permute.xlu0 %885
        %887 = vrot.lane.b32.xlu0 %v761, 88
        %v888 = vpop.permute.xlu0 %887
        %v890 = vsel %vm775, %v886, 0
        %v893 = vsel %vm775, %v888, 0
        %895 = vmatprep.subr.bf16.mxu0 0
        %896 = vmatpush1.bf16.xpose.msra.mxu0 %v893
        %897 = vmatprep.subr.bf16.mxu0 0
        %898 = vmatpush1.bf16.xpose.msra.mxu0 0
        %899 = vmatprep.subr.bf16.mxu0 0
        %900 = vmatpush1.bf16.xpose.msra.mxu0 0
        %901 = vmatprep.subr.bf16.mxu0 0
        %902 = vmatpush1.bf16.xpose.msra.mxu0 0
        %903 = vmatprep.subr.bf16.mxu0 0
        %904 = vmatpush1.bf16.xpose.msra.mxu0 0
        %905 = vmatprep.subr.bf16.mxu0 0
        %906 = vmatpush1.bf16.xpose.msra.mxu0 0
        %907 = vmatprep.subr.bf16.mxu0 0
        %908 = vmatpush1.bf16.xpose.msra.mxu0 0
        %909 = vmatprep.subr.bf16.mxu0 0
        %910 = vmatpush1.bf16.xpose.msra.mxu0 0
        %911 = vmatprep.subr.bf16.mxu0 0
        %912 = vmatpush1.bf16.xpose.msra.mxu0 0
        %913 = vmatprep.subr.bf16.mxu0 0
        %914 = vmatpush1.bf16.xpose.msra.mxu0 0
        %915 = vmatprep.subr.bf16.mxu0 0
        %916 = vmatpush1.bf16.xpose.msra.mxu0 0
        %917 = vmatprep.subr.bf16.mxu0 0
        %918 = vmatpush1.bf16.xpose.msra.mxu0 0
        %919 = vmatprep.subr.bf16.mxu0 0
        %920 = vmatpush1.bf16.xpose.msra.mxu0 0
        %921 = vmatprep.subr.bf16.mxu0 0
        %922 = vmatpush1.bf16.xpose.msra.mxu0 0
        %923 = vmatprep.subr.bf16.mxu0 0
        %924 = vmatpush1.bf16.xpose.msra.mxu0 0
        %925 = vmatprep.subr.bf16.mxu0 0
        %926 = vmatpush1.bf16.xpose.msra.mxu0 0
        %927 = vmatprep.mubr.bf16.mxu0 0
        %928 = vmatmul.mubr.bf16.gmra.mrb[0].mxu0 %v890
        %v929 = vpop.f32.mrb[0].mxu0
        %v930 = vadd.f32 %v770, %v929
        %v931 = vpop.f32.mrb[0].mxu0
        %v932 = vpop.f32.mrb[0].mxu0
        %v933 = vpop.f32.mrb[0].mxu0
        %934 = vdwg.mxu0
        %v935 = vsel %vm775, %v930, -inf
        %936 = vmax.xlane.f32.xlu0 %v935
        %v937 = vpop.xlane.xlu0 %936
        %v938 = vsub.f32 %v930, %v937
        %v939 = vmul.f32 %v938, 1.442695
        %v940 = vpow.pop %v939
        %v941 = vsel %vm775, %v940, 0.0
        %942 = vadd.xlane.f32.xlu0 %v941
        %v943 = vpop.xlane.xlu0 %942
        %v944 = vrcp.pop %v943
        %v945 = vmul.f32 %v940, %v944
        %v946 = vpack.c.bf16 %v945, %v945
        %947 = vrot.lane.b32.xlu0 %v761, 56
        %v948 = vpop.permute.xlu0 %947
        %v950 = vsel %vm775, %v946, 0
        %v953 = vsel %vm839, %v948, 0
        %955 = vmatprep.subr.bf16.mxu0 0
        %956 = vmatpush1.bf16.msra.mxu0 %v953
        %957 = vmatprep.subr.bf16.mxu0 0
        %958 = vmatpush1.bf16.msra.mxu0 0
        %959 = vmatprep.subr.bf16.mxu0 0
        %960 = vmatpush1.bf16.msra.mxu0 0
        %961 = vmatprep.subr.bf16.mxu0 0
        %962 = vmatpush1.bf16.msra.mxu0 0
        %963 = vmatprep.subr.bf16.mxu0 0
        %964 = vmatpush1.bf16.msra.mxu0 0
        %965 = vmatprep.subr.bf16.mxu0 0
        %966 = vmatpush1.bf16.msra.mxu0 0
        %967 = vmatprep.subr.bf16.mxu0 0
        %968 = vmatpush1.bf16.msra.mxu0 0
        %969 = vmatprep.subr.bf16.mxu0 0
        %970 = vmatpush1.bf16.msra.mxu0 0
        %971 = vmatprep.subr.bf16.mxu0 0
        %972 = vmatpush1.bf16.msra.mxu0 0
        %973 = vmatprep.subr.bf16.mxu0 0
        %974 = vmatpush1.bf16.msra.mxu0 0
        %975 = vmatprep.subr.bf16.mxu0 0
        %976 = vmatpush1.bf16.msra.mxu0 0
        %977 = vmatprep.subr.bf16.mxu0 0
        %978 = vmatpush1.bf16.msra.mxu0 0
        %979 = vmatprep.subr.bf16.mxu0 0
        %980 = vmatpush1.bf16.msra.mxu0 0
        %981 = vmatprep.subr.bf16.mxu0 0
        %982 = vmatpush1.bf16.msra.mxu0 0
        %983 = vmatprep.subr.bf16.mxu0 0
        %984 = vmatpush1.bf16.msra.mxu0 0
        %985 = vmatprep.subr.bf16.mxu0 0
        %986 = vmatpush1.bf16.msra.mxu0 0
        %987 = vmatprep.mubr.bf16.mxu0 0
        %988 = vmatmul.mubr.bf16.gmra.mrb[0].mxu0 %v950
        %v989 = vpop.f32.mrb[0].mxu0
        %v990 = vadd.f32 0.0, %v989
        %v991 = vpop.f32.mrb[0].mxu0
        %v992 = vpop.f32.mrb[0].mxu0
        %v993 = vpop.f32.mrb[0].mxu0
        %994 = vdwg.mxu0
        %v995 = vpack.c.bf16 %v990, %v990
        %v997 = vsel %vm775, %v995, 0
        %v1000 = vsel %vm839, %v763, 0
        %1002 = vmatprep.subr.bf16.mxu0 0
        %1003 = vmatpush1.bf16.msra.mxu0 %v1000
        %1004 = vmatprep.subr.bf16.mxu0 0
        %1005 = vmatpush1.bf16.msra.mxu0 0
        %1006 = vmatprep.subr.bf16.mxu0 0
        %1007 = vmatpush1.bf16.msra.mxu0 0
        %1008 = vmatprep.subr.bf16.mxu0 0
        %1009 = vmatpush1.bf16.msra.mxu0 0
        %1010 = vmatprep.subr.bf16.mxu0 0
        %1011 = vmatpush1.bf16.msra.mxu0 0
        %1012 = vmatprep.subr.bf16.mxu0 0
        %1013 = vmatpush1.bf16.msra.mxu0 0
        %1014 = vmatprep.subr.bf16.mxu0 0
        %1015 = vmatpush1.bf16.msra.mxu0 0
        %1016 = vmatprep.subr.bf16.mxu0 0
        %1017 = vmatpush1.bf16.msra.mxu0 0
        %1018 = vmatprep.subr.bf16.mxu0 0
        %1019 = vmatpush1.bf16.msra.mxu0 0
        %1020 = vmatprep.subr.bf16.mxu0 0
        %1021 = vmatpush1.bf16.msra.mxu0 0
        %1022 = vmatprep.subr.bf16.mxu0 0
        %1023 = vmatpush1.bf16.msra.mxu0 0
        %1024 = vmatprep.subr.bf16.mxu0 0
        %1025 = vmatpush1.bf16.msra.mxu0 0
        %1026 = vmatprep.subr.bf16.mxu0 0
        %1027 = vmatpush1.bf16.msra.mxu0 0
        %1028 = vmatprep.subr.bf16.mxu0 0
        %1029 = vmatpush1.bf16.msra.mxu0 0
        %1030 = vmatprep.subr.bf16.mxu0 0
        %1031 = vmatpush1.bf16.msra.mxu0 0
        %1032 = vmatprep.subr.bf16.mxu0 0
        %1033 = vmatpush1.bf16.msra.mxu0 0
        %1034 = vmatprep.mubr.bf16.mxu0 0
        %1035 = vmatmul.mubr.bf16.gmra.mrb[0].mxu0 %v997
        %v1036 = vpop.f32.mrb[0].mxu0
        %v1037 = vadd.f32 0.0, %v1036
        %v1038 = vpop.f32.mrb[0].mxu0
        %v1039 = vpop.f32.mrb[0].mxu0
        %v1040 = vpop.f32.mrb[0].mxu0
        %1041 = vdwg.mxu0
        %v1043 = vsel %vm775, %v883, 0
        %v1046 = vsel %vm839, %v762, 0
        %1048 = vmatprep.subr.bf16.mxu0 0
        %1049 = vmatpush1.bf16.msra.mxu0 %v1046
        %1050 = vmatprep.subr.bf16.mxu0 0
        %1051 = vmatpush1.bf16.msra.mxu0 0
        %1052 = vmatprep.subr.bf16.mxu0 0
        %1053 = vmatpush1.bf16.msra.mxu0 0
        %1054 = vmatprep.subr.bf16.mxu0 0
        %1055 = vmatpush1.bf16.msra.mxu0 0
        %1056 = vmatprep.subr.bf16.mxu0 0
        %1057 = vmatpush1.bf16.msra.mxu0 0
        %1058 = vmatprep.subr.bf16.mxu0 0
        %1059 = vmatpush1.bf16.msra.mxu0 0
        %1060 = vmatprep.subr.bf16.mxu0 0
        %1061 = vmatpush1.bf16.msra.mxu0 0
        %1062 = vmatprep.subr.bf16.mxu0 0
        %1063 = vmatpush1.bf16.msra.mxu0 0
        %1064 = vmatprep.subr.bf16.mxu0 0
        %1065 = vmatpush1.bf16.msra.mxu0 0
        %1066 = vmatprep.subr.bf16.mxu0 0
        %1067 = vmatpush1.bf16.msra.mxu0 0
        %1068 = vmatprep.subr.bf16.mxu0 0
        %1069 = vmatpush1.bf16.msra.mxu0 0
        %1070 = vmatprep.subr.bf16.mxu0 0
        %1071 = vmatpush1.bf16.msra.mxu0 0
        %1072 = vmatprep.subr.bf16.mxu0 0
        %1073 = vmatpush1.bf16.msra.mxu0 0
        %1074 = vmatprep.subr.bf16.mxu0 0
        %1075 = vmatpush1.bf16.msra.mxu0 0
        %1076 = vmatprep.subr.bf16.mxu0 0
        %1077 = vmatpush1.bf16.msra.mxu0 0
        %1078 = vmatprep.subr.bf16.mxu0 0
        %1079 = vmatpush1.bf16.msra.mxu0 0
        %1080 = vmatprep.mubr.bf16.mxu0 0
        %1081 = vmatmul.mubr.bf16.gmra.mrb[0].mxu0 %v1043
        %v1082 = vpop.f32.mrb[0].mxu0
        %v1083 = vadd.f32 %v1037, %v1082
        %v1084 = vpop.f32.mrb[0].mxu0
        %v1085 = vpop.f32.mrb[0].mxu0
        %v1086 = vpop.f32.mrb[0].mxu0
        %1087 = vdwg.mxu0
        %1088 = vrot.lane.b32.xlu0 %v760, 112
        %v1089 = vpop.permute.xlu0 %1088
        %1090 = vrot.lane.b32.xlu0 %v761, 80
        %v1091 = vpop.permute.xlu0 %1090
        %v1093 = vsel %vm775, %v1089, 0
        %v1096 = vsel %vm775, %v1091, 0
        %1098 = vmatprep.subr.bf16.mxu0 0
        %1099 = vmatpush1.bf16.xpose.msra.mxu0 %v1096
        %1100 = vmatprep.subr.bf16.mxu0 0
        %1101 = vmatpush1.bf16.xpose.msra.mxu0 0
        %1102 = vmatprep.subr.bf16.mxu0 0
        %1103 = vmatpush1.bf16.xpose.msra.mxu0 0
        %1104 = vmatprep.subr.bf16.mxu0 0
        %1105 = vmatpush1.bf16.xpose.msra.mxu0 0
        %1106 = vmatprep.subr.bf16.mxu0 0
        %1107 = vmatpush1.bf16.xpose.msra.mxu0 0
        %1108 = vmatprep.subr.bf16.mxu0 0
        %1109 = vmatpush1.bf16.xpose.msra.mxu0 0
        %1110 = vmatprep.subr.bf16.mxu0 0
        %1111 = vmatpush1.bf16.xpose.msra.mxu0 0
        %1112 = vmatprep.subr.bf16.mxu0 0
        %1113 = vmatpush1.bf16.xpose.msra.mxu0 0
        %1114 = vmatprep.subr.bf16.mxu0 0
        %1115 = vmatpush1.bf16.xpose.msra.mxu0 0
        %1116 = vmatprep.subr.bf16.mxu0 0
        %1117 = vmatpush1.bf16.xpose.msra.mxu0 0
        %1118 = vmatprep.subr.bf16.mxu0 0
        %1119 = vmatpush1.bf16.xpose.msra.mxu0 0
        %1120 = vmatprep.subr.bf16.mxu0 0
        %1121 = vmatpush1.bf16.xpose.msra.mxu0 0
        %1122 = vmatprep.subr.bf16.mxu0 0
        %1123 = vmatpush1.bf16.xpose.msra.mxu0 0
        %1124 = vmatprep.subr.bf16.mxu0 0
        %1125 = vmatpush1.bf16.xpose.msra.mxu0 0
        %1126 = vmatprep.subr.bf16.mxu0 0
        %1127 = vmatpush1.bf16.xpose.msra.mxu0 0
        %1128 = vmatprep.subr.bf16.mxu0 0
        %1129 = vmatpush1.bf16.xpose.msra.mxu0 0
        %1130 = vmatprep.mubr.bf16.mxu0 0
        %1131 = vmatmul.mubr.bf16.gmra.mrb[0].mxu0 %v1093
        %v1132 = vpop.f32.mrb[0].mxu0
        %v1133 = vadd.f32 %v770, %v1132
        %v1134 = vpop.f32.mrb[0].mxu0
        %v1135 = vpop.f32.mrb[0].mxu0
        %v1136 = vpop.f32.mrb[0].mxu0
        %1137 = vdwg.mxu0
        %v1138 = vsel %vm775, %v1133, -inf
        %1139 = vmax.xlane.f32.xlu0 %v1138
        %v1140 = vpop.xlane.xlu0 %1139
        %v1141 = vsub.f32 %v1133, %v1140
        %v1142 = vmul.f32 %v1141, 1.442695
        %v1143 = vpow.pop %v1142
        %v1144 = vsel %vm775, %v1143, 0.0
        %1145 = vadd.xlane.f32.xlu0 %v1144
        %v1146 = vpop.xlane.xlu0 %1145
        %v1147 = vrcp.pop %v1146
        %v1148 = vmul.f32 %v1143, %v1147
        %v1149 = vpack.c.bf16 %v1148, %v1148
        %1150 = vrot.lane.b32.xlu0 %v761, 48
        %v1151 = vpop.permute.xlu0 %1150
        %v1153 = vsel %vm775, %v1149, 0
        %v1156 = vsel %vm839, %v1151, 0
        %1158 = vmatprep.subr.bf16.mxu0 0
        %1159 = vmatpush1.bf16.msra.mxu0 %v1156
        %1160 = vmatprep.subr.bf16.mxu0 0
        %1161 = vmatpush1.bf16.msra.mxu0 0
        %1162 = vmatprep.subr.bf16.mxu0 0
        %1163 = vmatpush1.bf16.msra.mxu0 0
        %1164 = vmatprep.subr.bf16.mxu0 0
        %1165 = vmatpush1.bf16.msra.mxu0 0
        %1166 = vmatprep.subr.bf16.mxu0 0
        %1167 = vmatpush1.bf16.msra.mxu0 0
        %1168 = vmatprep.subr.bf16.mxu0 0
        %1169 = vmatpush1.bf16.msra.mxu0 0
        %1170 = vmatprep.subr.bf16.mxu0 0
        %1171 = vmatpush1.bf16.msra.mxu0 0
        %1172 = vmatprep.subr.bf16.mxu0 0
        %1173 = vmatpush1.bf16.msra.mxu0 0
        %1174 = vmatprep.subr.bf16.mxu0 0
        %1175 = vmatpush1.bf16.msra.mxu0 0
        %1176 = vmatprep.subr.bf16.mxu0 0
        %1177 = vmatpush1.bf16.msra.mxu0 0
        %1178 = vmatprep.subr.bf16.mxu0 0
        %1179 = vmatpush1.bf16.msra.mxu0 0
        %1180 = vmatprep.subr.bf16.mxu0 0
        %1181 = vmatpush1.bf16.msra.mxu0 0
        %1182 = vmatprep.subr.bf16.mxu0 0
        %1183 = vmatpush1.bf16.msra.mxu0 0
        %1184 = vmatprep.subr.bf16.mxu0 0
        %1185 = vmatpush1.bf16.msra.mxu0 0
        %1186 = vmatprep.subr.bf16.mxu0 0
        %1187 = vmatpush1.bf16.msra.mxu0 0
        %1188 = vmatprep.subr.bf16.mxu0 0
        %1189 = vmatpush1.bf16.msra.mxu0 0
        %1190 = vmatprep.mubr.bf16.mxu0 0
        %1191 = vmatmul.mubr.bf16.gmra.mrb[0].mxu0 %v1153
        %v1192 = vpop.f32.mrb[0].mxu0
        %v1193 = vadd.f32 0.0, %v1192
        %v1194 = vpop.f32.mrb[0].mxu0
        %v1195 = vpop.f32.mrb[0].mxu0
        %v1196 = vpop.f32.mrb[0].mxu0
        %1197 = vdwg.mxu0
        %v1198 = vpack.c.bf16 %v1193, %v1193
        %v1200 = vsel %vm775, %v1198, 0
        %v1203 = vsel %vm839, %v764, 0
        %1205 = vmatprep.subr.bf16.mxu0 0
        %1206 = vmatpush1.bf16.msra.mxu0 %v1203
        %1207 = vmatprep.subr.bf16.mxu0 0
        %1208 = vmatpush1.bf16.msra.mxu0 0
        %1209 = vmatprep.subr.bf16.mxu0 0
        %1210 = vmatpush1.bf16.msra.mxu0 0
        %1211 = vmatprep.subr.bf16.mxu0 0
        %1212 = vmatpush1.bf16.msra.mxu0 0
        %1213 = vmatprep.subr.bf16.mxu0 0
        %1214 = vmatpush1.bf16.msra.mxu0 0
        %1215 = vmatprep.subr.bf16.mxu0 0
        %1216 = vmatpush1.bf16.msra.mxu0 0
        %1217 = vmatprep.subr.bf16.mxu0 0
        %1218 = vmatpush1.bf16.msra.mxu0 0
        %1219 = vmatprep.subr.bf16.mxu0 0
        %1220 = vmatpush1.bf16.msra.mxu0 0
        %1221 = vmatprep.subr.bf16.mxu0 0
        %1222 = vmatpush1.bf16.msra.mxu0 0
        %1223 = vmatprep.subr.bf16.mxu0 0
        %1224 = vmatpush1.bf16.msra.mxu0 0
        %1225 = vmatprep.subr.bf16.mxu0 0
        %1226 = vmatpush1.bf16.msra.mxu0 0
        %1227 = vmatprep.subr.bf16.mxu0 0
        %1228 = vmatpush1.bf16.msra.mxu0 0
        %1229 = vmatprep.subr.bf16.mxu0 0
        %1230 = vmatpush1.bf16.msra.mxu0 0
        %1231 = vmatprep.subr.bf16.mxu0 0
        %1232 = vmatpush1.bf16.msra.mxu0 0
        %1233 = vmatprep.subr.bf16.mxu0 0
        %1234 = vmatpush1.bf16.msra.mxu0 0
        %1235 = vmatprep.subr.bf16.mxu0 0
        %1236 = vmatpush1.bf16.msra.mxu0 0
        %1237 = vmatprep.mubr.bf16.mxu0 0
        %1238 = vmatmul.mubr.bf16.gmra.mrb[0].mxu0 %v1200
        %v1239 = vpop.f32.mrb[0].mxu0
        %v1240 = vadd.f32 0.0, %v1239
        %v1241 = vpop.f32.mrb[0].mxu0
        %v1242 = vpop.f32.mrb[0].mxu0
        %v1243 = vpop.f32.mrb[0].mxu0
        %1244 = vdwg.mxu0
        %v1245 = vadd.f32 %v1083, %v1240
        %1246 = vrot.lane.b32.xlu0 %v760, 104
        %v1247 = vpop.permute.xlu0 %1246
        %1248 = vrot.lane.b32.xlu0 %v761, 72
        %v1249 = vpop.permute.xlu0 %1248
        %v1251 = vsel %vm775, %v1247, 0
        %v1254 = vsel %vm775, %v1249, 0
        %1256 = vmatprep.subr.bf16.mxu0 0
        %1257 = vmatpush1.bf16.xpose.msra.mxu0 %v1254
        %1258 = vmatprep.subr.bf16.mxu0 0
        %1259 = vmatpush1.bf16.xpose.msra.mxu0 0
        %1260 = vmatprep.subr.bf16.mxu0 0
        %1261 = vmatpush1.bf16.xpose.msra.mxu0 0
        %1262 = vmatprep.subr.bf16.mxu0 0
        %1263 = vmatpush1.bf16.xpose.msra.mxu0 0
        %1264 = vmatprep.subr.bf16.mxu0 0
        %1265 = vmatpush1.bf16.xpose.msra.mxu0 0
        %1266 = vmatprep.subr.bf16.mxu0 0
        %1267 = vmatpush1.bf16.xpose.msra.mxu0 0
        %1268 = vmatprep.subr.bf16.mxu0 0
        %1269 = vmatpush1.bf16.xpose.msra.mxu0 0
        %1270 = vmatprep.subr.bf16.mxu0 0
        %1271 = vmatpush1.bf16.xpose.msra.mxu0 0
        %1272 = vmatprep.subr.bf16.mxu0 0
        %1273 = vmatpush1.bf16.xpose.msra.mxu0 0
        %1274 = vmatprep.subr.bf16.mxu0 0
        %1275 = vmatpush1.bf16.xpose.msra.mxu0 0
        %1276 = vmatprep.subr.bf16.mxu0 0
        %1277 = vmatpush1.bf16.xpose.msra.mxu0 0
        %1278 = vmatprep.subr.bf16.mxu0 0
        %1279 = vmatpush1.bf16.xpose.msra.mxu0 0
        %1280 = vmatprep.subr.bf16.mxu0 0
        %1281 = vmatpush1.bf16.xpose.msra.mxu0 0
        %1282 = vmatprep.subr.bf16.mxu0 0
        %1283 = vmatpush1.bf16.xpose.msra.mxu0 0
        %1284 = vmatprep.subr.bf16.mxu0 0
        %1285 = vmatpush1.bf16.xpose.msra.mxu0 0
        %1286 = vmatprep.subr.bf16.mxu0 0
        %1287 = vmatpush1.bf16.xpose.msra.mxu0 0
        %1288 = vmatprep.mubr.bf16.mxu0 0
        %1289 = vmatmul.mubr.bf16.gmra.mrb[0].mxu0 %v1251
        %v1290 = vpop.f32.mrb[0].mxu0
        %v1291 = vadd.f32 %v770, %v1290
        %v1292 = vpop.f32.mrb[0].mxu0
        %v1293 = vpop.f32.mrb[0].mxu0
        %v1294 = vpop.f32.mrb[0].mxu0
        %1295 = vdwg.mxu0
        %v1296 = vsel %vm775, %v1291, -inf
        %1297 = vmax.xlane.f32.xlu0 %v1296
        %v1298 = vpop.xlane.xlu0 %1297
        %v1299 = vsub.f32 %v1291, %v1298
        %v1300 = vmul.f32 %v1299, 1.442695
        %v1301 = vpow.pop %v1300
        %v1302 = vsel %vm775, %v1301, 0.0
        %1303 = vadd.xlane.f32.xlu0 %v1302
        %v1304 = vpop.xlane.xlu0 %1303
        %v1305 = vrcp.pop %v1304
        %v1306 = vmul.f32 %v1301, %v1305
        %v1307 = vpack.c.bf16 %v1306, %v1306
        %1308 = vrot.lane.b32.xlu0 %v761, 40
        %v1309 = vpop.permute.xlu0 %1308
        %v1311 = vsel %vm775, %v1307, 0
        %v1314 = vsel %vm839, %v1309, 0
        %1316 = vmatprep.subr.bf16.mxu0 0
        %1317 = vmatpush1.bf16.msra.mxu0 %v1314
        %1318 = vmatprep.subr.bf16.mxu0 0
        %1319 = vmatpush1.bf16.msra.mxu0 0
        %1320 = vmatprep.subr.bf16.mxu0 0
        %1321 = vmatpush1.bf16.msra.mxu0 0
        %1322 = vmatprep.subr.bf16.mxu0 0
        %1323 = vmatpush1.bf16.msra.mxu0 0
        %1324 = vmatprep.subr.bf16.mxu0 0
        %1325 = vmatpush1.bf16.msra.mxu0 0
        %1326 = vmatprep.subr.bf16.mxu0 0
        %1327 = vmatpush1.bf16.msra.mxu0 0
        %1328 = vmatprep.subr.bf16.mxu0 0
        %1329 = vmatpush1.bf16.msra.mxu0 0
        %1330 = vmatprep.subr.bf16.mxu0 0
        %1331 = vmatpush1.bf16.msra.mxu0 0
        %1332 = vmatprep.subr.bf16.mxu0 0
        %1333 = vmatpush1.bf16.msra.mxu0 0
        %1334 = vmatprep.subr.bf16.mxu0 0
        %1335 = vmatpush1.bf16.msra.mxu0 0
        %1336 = vmatprep.subr.bf16.mxu0 0
        %1337 = vmatpush1.bf16.msra.mxu0 0
        %1338 = vmatprep.subr.bf16.mxu0 0
        %1339 = vmatpush1.bf16.msra.mxu0 0
        %1340 = vmatprep.subr.bf16.mxu0 0
        %1341 = vmatpush1.bf16.msra.mxu0 0
        %1342 = vmatprep.subr.bf16.mxu0 0
        %1343 = vmatpush1.bf16.msra.mxu0 0
        %1344 = vmatprep.subr.bf16.mxu0 0
        %1345 = vmatpush1.bf16.msra.mxu0 0
        %1346 = vmatprep.subr.bf16.mxu0 0
        %1347 = vmatpush1.bf16.msra.mxu0 0
        %1348 = vmatprep.mubr.bf16.mxu0 0
        %1349 = vmatmul.mubr.bf16.gmra.mrb[0].mxu0 %v1311
        %v1350 = vpop.f32.mrb[0].mxu0
        %v1351 = vadd.f32 0.0, %v1350
        %v1352 = vpop.f32.mrb[0].mxu0
        %v1353 = vpop.f32.mrb[0].mxu0
        %v1354 = vpop.f32.mrb[0].mxu0
        %1355 = vdwg.mxu0
        %v1356 = vpack.c.bf16 %v1351, %v1351
        %v1358 = vsel %vm775, %v1356, 0
        %v1361 = vsel %vm839, %v765, 0
        %1363 = vmatprep.subr.bf16.mxu0 0
        %1364 = vmatpush1.bf16.msra.mxu0 %v1361
        %1365 = vmatprep.subr.bf16.mxu0 0
        %1366 = vmatpush1.bf16.msra.mxu0 0
        %1367 = vmatprep.subr.bf16.mxu0 0
        %1368 = vmatpush1.bf16.msra.mxu0 0
        %1369 = vmatprep.subr.bf16.mxu0 0
        %1370 = vmatpush1.bf16.msra.mxu0 0
        %1371 = vmatprep.subr.bf16.mxu0 0
        %1372 = vmatpush1.bf16.msra.mxu0 0
        %1373 = vmatprep.subr.bf16.mxu0 0
        %1374 = vmatpush1.bf16.msra.mxu0 0
        %1375 = vmatprep.subr.bf16.mxu0 0
        %1376 = vmatpush1.bf16.msra.mxu0 0
        %1377 = vmatprep.subr.bf16.mxu0 0
        %1378 = vmatpush1.bf16.msra.mxu0 0
        %1379 = vmatprep.subr.bf16.mxu0 0
        %1380 = vmatpush1.bf16.msra.mxu0 0
        %1381 = vmatprep.subr.bf16.mxu0 0
        %1382 = vmatpush1.bf16.msra.mxu0 0
        %1383 = vmatprep.subr.bf16.mxu0 0
        %1384 = vmatpush1.bf16.msra.mxu0 0
        %1385 = vmatprep.subr.bf16.mxu0 0
        %1386 = vmatpush1.bf16.msra.mxu0 0
        %1387 = vmatprep.subr.bf16.mxu0 0
        %1388 = vmatpush1.bf16.msra.mxu0 0
        %1389 = vmatprep.subr.bf16.mxu0 0
        %1390 = vmatpush1.bf16.msra.mxu0 0
        %1391 = vmatprep.subr.bf16.mxu0 0
        %1392 = vmatpush1.bf16.msra.mxu0 0
        %1393 = vmatprep.subr.bf16.mxu0 0
        %1394 = vmatpush1.bf16.msra.mxu0 0
        %1395 = vmatprep.mubr.bf16.mxu0 0
        %1396 = vmatmul.mubr.bf16.gmra.mrb[0].mxu0 %v1358
        %v1397 = vpop.f32.mrb[0].mxu0
        %v1398 = vadd.f32 0.0, %v1397
        %v1399 = vpop.f32.mrb[0].mxu0
        %v1400 = vpop.f32.mrb[0].mxu0
        %v1401 = vpop.f32.mrb[0].mxu0
        %1402 = vdwg.mxu0
        %v1403 = vadd.f32 %v1245, %v1398
        %v1404 = vld [vmem:[%s652] sm:$0x1]
        %v1406 = vlaneseq
        %v1407 = vshrl.u32 %v1406, 7
        %v1408 = vsub.s32 0, %v1407
        %v1409 = vrot.slane %v1404, %v1408
        %v1411 = vadd.f32 %v1403, %v1409
        %v1412 = vadd.f32 %v689, %v1411
        %v1413 = vld [vmem:[%s655] sm:$0x1]
        %v1414 = vld [vmem:[%s658] sm:$0x1]
        %v1415 = vsel %vm715, %v1412, 0.0
        %1416 = vadd.xlane.f32.xlu0 %v1415
        %v1417 = vpop.xlane.xlu0 %1416
        %v1418 = vrcp.pop 32.0
        %v1419 = vmul.f32 %v1417, %v1418
        %v1420 = vsub.f32 %v1412, %v1419
        %v1421 = vmul.f32 %v1420, %v1420
        %v1422 = vsel %vm715, %v1421, 0.0
        %1423 = vadd.xlane.f32.xlu0 %v1422
        %v1424 = vpop.xlane.xlu0 %1423
        %v1425 = vmul.f32 %v1424, %v1418
        %v1426 = vadd.f32 %v1425, 1e-05
        %v1427 = vrsqrt.pop %v1426
        %v1428 = vmul.f32 %v1420, %v1427
        %v1430 = vlaneseq
        %v1431 = vshrl.u32 %v1430, 7
        %v1432 = vsub.s32 0, %v1431
        %v1433 = vrot.slane %v1413, %v1432
        %v1435 = vmul.f32 %v1428, %v1433
        %v1437 = vlaneseq
        %v1438 = vshrl.u32 %v1437, 7
        %v1439 = vsub.s32 0, %v1438
        %v1440 = vrot.slane %v1414, %v1439
        %v1442 = vadd.f32 %v1435, %v1440
        %v1443 = vpack.c.bf16 %v1442, %v1442
        %v1444 = vld [vmem:[%s663] sm:$0xf]
        %v1445 = vld [vmem:[%s663 + $0x4] sm:$0xf]
        %v1446 = vld [vmem:[%s663 + $0x8] sm:$0xf]
        %v1447 = vld [vmem:[%s663 + $0xc] sm:$0xf]
        %v1448 = vld [vmem:[%s666] sm:$0x1]
        %v1450 = vlaneseq
        %v1451 = vshrl.u32 %v1450, 7
        %v1452 = vsub.s32 0, %v1451
        %v1453 = vrot.slane %v1448, %v1452
        %v1459 = vunpack.c.l.b16 %v1444
        %v1460 = vunpack.c.l.b16 %v1445
        %v1461 = vunpack.c.l.b16 %v1446
        %v1462 = vunpack.c.l.b16 %v1447
        %v1463 = vpack.c.b16 %v1460, %v1459
        %v1464 = vpack.c.b16 %v1462, %v1461
        %v1468 = vsel %vm715, %v1443, 0
        %1470 = vmatprep.subr.bf16.mxu0 0
        %1471 = vmatpush1.bf16.msra.mxu0 %v1463
        %1472 = vmatprep.subr.bf16.mxu0 0
        %1473 = vmatpush1.bf16.msra.mxu0 %v1464
        %1474 = vmatprep.subr.bf16.mxu0 0
        %1475 = vmatpush1.bf16.msra.mxu0 0
        %1476 = vmatprep.subr.bf16.mxu0 0
        %1477 = vmatpush1.bf16.msra.mxu0 0
        %1478 = vmatprep.subr.bf16.mxu0 0
        %1479 = vmatpush1.bf16.msra.mxu0 0
        %1480 = vmatprep.subr.bf16.mxu0 0
        %1481 = vmatpush1.bf16.msra.mxu0 0
        %1482 = vmatprep.subr.bf16.mxu0 0
        %1483 = vmatpush1.bf16.msra.mxu0 0
        %1484 = vmatprep.subr.bf16.mxu0 0
        %1485 = vmatpush1.bf16.msra.mxu0 0
        %1486 = vmatprep.subr.bf16.mxu0 0
        %1487 = vmatpush1.bf16.msra.mxu0 0
        %1488 = vmatprep.subr.bf16.mxu0 0
        %1489 = vmatpush1.bf16.msra.mxu0 0
        %1490 = vmatprep.subr.bf16.mxu0 0
        %1491 = vmatpush1.bf16.msra.mxu0 0
        %1492 = vmatprep.subr.bf16.mxu0 0
        %1493 = vmatpush1.bf16.msra.mxu0 0
        %1494 = vmatprep.subr.bf16.mxu0 0
        %1495 = vmatpush1.bf16.msra.mxu0 0
        %1496 = vmatprep.subr.bf16.mxu0 0
        %1497 = vmatpush1.bf16.msra.mxu0 0
        %1498 = vmatprep.subr.bf16.mxu0 0
        %1499 = vmatpush1.bf16.msra.mxu0 0
        %1500 = vmatprep.subr.bf16.mxu0 0
        %1501 = vmatpush1.bf16.msra.mxu0 0
        %1502 = vmatprep.mubr.bf16.mxu0 0
        %1503 = vmatmul.mubr.bf16.gmra.mrb[0].mxu0 %v1468
        %v1504 = vpop.f32.mrb[0].mxu0
        %v1505 = vadd.f32 %v1453, %v1504
        %v1506 = vpop.f32.mrb[0].mxu0
        %v1507 = vpop.f32.mrb[0].mxu0
        %v1508 = vpop.f32.mrb[0].mxu0
        %1509 = vdwg.mxu0
        %v1510 = vmax.f32 %v1505, 0.0
        %v1511 = vpack.c.bf16 %v1510, %v1510
        %v1512 = vld [vmem:[%s671] sm:$0xf]
        %v1513 = vld [vmem:[%s671 + $0x4] sm:$0xf]
        %v1514 = vld [vmem:[%s671 + $0x8] sm:$0xf]
        %v1515 = vld [vmem:[%s671 + $0xc] sm:$0xf]
        %v1516 = vld [vmem:[%s671 + $0x10] sm:$0xf]
        %v1517 = vld [vmem:[%s671 + $0x14] sm:$0xf]
        %v1518 = vld [vmem:[%s671 + $0x18] sm:$0xf]
        %v1519 = vld [vmem:[%s671 + $0x1c] sm:$0xf]
        %v1520 = vld [vmem:[%s671 + $0x20] sm:$0xf]
        %v1521 = vld [vmem:[%s671 + $0x24] sm:$0xf]
        %v1522 = vld [vmem:[%s671 + $0x28] sm:$0xf]
        %v1523 = vld [vmem:[%s671 + $0x2c] sm:$0xf]
        %v1524 = vld [vmem:[%s671 + $0x30] sm:$0xf]
        %v1525 = vld [vmem:[%s671 + $0x34] sm:$0xf]
        %v1526 = vld [vmem:[%s671 + $0x38] sm:$0xf]
        %v1527 = vld [vmem:[%s671 + $0x3c] sm:$0xf]
        %v1528 = vld [vmem:[%s674] sm:$0x1]
        %v1530 = vlaneseq
        %v1531 = vshrl.u32 %v1530, 7
        %v1532 = vsub.s32 0, %v1531
        %v1533 = vrot.slane %v1528, %v1532
        %v1551 = vunpack.c.l.b16 %v1512
        %v1552 = vunpack.c.l.b16 %v1513
        %v1553 = vunpack.c.l.b16 %v1514
        %v1554 = vunpack.c.l.b16 %v1515
        %v1555 = vunpack.c.l.b16 %v1516
        %v1556 = vunpack.c.l.b16 %v1517
        %v1557 = vunpack.c.l.b16 %v1518
        %v1558 = vunpack.c.l.b16 %v1519
        %v1559 = vunpack.c.l.b16 %v1520
        %v1560 = vunpack.c.l.b16 %v1521
        %v1561 = vunpack.c.l.b16 %v1522
        %v1562 = vunpack.c.l.b16 %v1523
        %v1563 = vunpack.c.l.b16 %v1524
        %v1564 = vunpack.c.l.b16 %v1525
        %v1565 = vunpack.c.l.b16 %v1526
        %v1566 = vunpack.c.l.b16 %v1527
        %v1567 = vpack.c.b16 %v1552, %v1551
        %v1568 = vpack.c.b16 %v1554, %v1553
        %v1569 = vpack.c.b16 %v1556, %v1555
        %v1570 = vpack.c.b16 %v1558, %v1557
        %v1571 = vpack.c.b16 %v1560, %v1559
        %v1572 = vpack.c.b16 %v1562, %v1561
        %v1573 = vpack.c.b16 %v1564, %v1563
        %v1574 = vpack.c.b16 %v1566, %v1565
        %1583 = vmatprep.subr.bf16.mxu0 0
        %1584 = vmatpush1.bf16.msra.mxu0 %v1567
        %1585 = vmatprep.subr.bf16.mxu0 0
        %1586 = vmatpush1.bf16.msra.mxu0 %v1568
        %1587 = vmatprep.subr.bf16.mxu0 0
        %1588 = vmatpush1.bf16.msra.mxu0 %v1569
        %1589 = vmatprep.subr.bf16.mxu0 0
        %1590 = vmatpush1.bf16.msra.mxu0 %v1570
        %1591 = vmatprep.subr.bf16.mxu0 0
        %1592 = vmatpush1.bf16.msra.mxu0 %v1571
        %1593 = vmatprep.subr.bf16.mxu0 0
        %1594 = vmatpush1.bf16.msra.mxu0 %v1572
        %1595 = vmatprep.subr.bf16.mxu0 0
        %1596 = vmatpush1.bf16.msra.mxu0 %v1573
        %1597 = vmatprep.subr.bf16.mxu0 0
        %1598 = vmatpush1.bf16.msra.mxu0 %v1574
        %1599 = vmatprep.subr.bf16.mxu0 0
        %1600 = vmatpush1.bf16.msra.mxu0 0
        %1601 = vmatprep.subr.bf16.mxu0 0
        %1602 = vmatpush1.bf16.msra.mxu0 0
        %1603 = vmatprep.subr.bf16.mxu0 0
        %1604 = vmatpush1.bf16.msra.mxu0 0
        %1605 = vmatprep.subr.bf16.mxu0 0
        %1606 = vmatpush1.bf16.msra.mxu0 0
        %1607 = vmatprep.subr.bf16.mxu0 0
        %1608 = vmatpush1.bf16.msra.mxu0 0
        %1609 = vmatprep.subr.bf16.mxu0 0
        %1610 = vmatpush1.bf16.msra.mxu0 0
        %1611 = vmatprep.subr.bf16.mxu0 0
        %1612 = vmatpush1.bf16.msra.mxu0 0
        %1613 = vmatprep.subr.bf16.mxu0 0
        %1614 = vmatpush1.bf16.msra.mxu0 0
        %1615 = vmatprep.mubr.bf16.mxu0 0
        %1616 = vmatmul.mubr.bf16.gmra.mrb[0].mxu0 %v1511
        %v1617 = vpop.f32.mrb[0].mxu0
        %v1618 = vadd.f32 %v1533, %v1617
        %v1619 = vpop.f32.mrb[0].mxu0
        %v1620 = vpop.f32.mrb[0].mxu0
        %v1621 = vpop.f32.mrb[0].mxu0
        %1622 = vdwg.mxu0
        %v1623 = vadd.f32 %v1442, %v1618
        %v1624 = vld [vmem:[%s677] sm:$0x1]
        %v1625 = vld [vmem:[%s680] sm:$0x1]
        %v1626 = vsel %vm715, %v1623, 0.0
        %1627 = vadd.xlane.f32.xlu0 %v1626
        %v1628 = vpop.xlane.xlu0 %1627
        %v1629 = vmul.f32 %v1628, %v1418
        %v1630 = vsub.f32 %v1623, %v1629
        %v1631 = vmul.f32 %v1630, %v1630
        %v1632 = vsel %vm715, %v1631, 0.0
        %1633 = vadd.xlane.f32.xlu0 %v1632
        %v1634 = vpop.xlane.xlu0 %1633
        %v1635 = vmul.f32 %v1634, %v1418
        %v1636 = vadd.f32 %v1635, 1e-05
        %v1637 = vrsqrt.pop %v1636
        %v1638 = vmul.f32 %v1630, %v1637
        %v1640 = vlaneseq
        %v1641 = vshrl.u32 %v1640, 7
        %v1642 = vsub.s32 0, %v1641
        %v1643 = vrot.slane %v1624, %v1642
        %v1645 = vmul.f32 %v1638, %v1643
        %v1647 = vlaneseq
        %v1648 = vshrl.u32 %v1647, 7
        %v1649 = vsub.s32 0, %v1648
        %v1650 = vrot.slane %v1625, %v1649
        %v1652 = vadd.f32 %v1645, %v1650
        %1653 = vst.msk [vmem:[#allocation2] sm:$0xff] %vm715, %v1652
        %p1654 = scmp.eq.s32.totalorder %s33, 5
        // Predicated region
        $region81: #{tpu_custom_call.1} parent=75 // pred_check
          %p1655 = pneg %p1654
        $region82: #{tpu_custom_call.1} parent=75 // pred_check_branch
          %1657 = sbr.rel (%p1655) target = $region84
        $region83: #{tpu_custom_call.1} parent=75 // pred_region
          %1658 = vst.msk [vmem:[%s629] sm:$0xff] %vm715, %v1652
        $region84: #{tpu_custom_call.1} parent=75 // pred_fallthru
          _
        %s1659 = sand.u32 %s412, 1
        %s1660 = scalar_lea.sflag [#allocation4], %s1659
        %s1661 = sand.u32 %s412, 1
        %s1662 = smul.addr %s1661, 8
        %s1663 = scalar_lea.vmem [#allocation3], %s1662
        // Predicated region
        $region85: #{tpu_custom_call.1} parent=75 // pred_check
          %p1664 = pneg %p422
        $region86: #{tpu_custom_call.1} parent=75 // pred_check_branch
          %1666 = sbr.rel (%p1664) target = $region88
        $region87: #{tpu_custom_call.1} parent=75 // pred_region
          %s1668 = ssub.s32 128, 128
          %1669 = vsyncadd %s1660, %s1668
          %s1670 = smul.addr %s32, 128
          %s1671 = scalar_lea.hbm %s14, %s1670
          %s1673 = sshll.u32 %s1663, 4
          %s1674 = int_to_ptr.vmem [resolvable:$true] %s1673
          %1676 = dma.vmem_to_hbm [thread:$0]  %s1674, 128, %s1671, %s1660
        $region88: #{tpu_custom_call.1} parent=75 // pred_fallthru
          _
      $region76: #{tpu_custom_call.1} parent=5 // pred_fallthru
        _
      %p1677 = scmp.le.s32.totalorder 2, %s23
      // Predicated region
      $region89: #{tpu_custom_call.1} parent=5 // pred_check
        %p1678 = pneg %p1677
      $region90: #{tpu_custom_call.1} parent=5 // pred_check_branch
        %1680 = sbr.rel (%p1678) target = $region92
      $region91: #{tpu_custom_call.1} parent=5 // pred_region
        %s1681 = ssub.s32 %s23, 2
        // Predicated region
        $region93: #{tpu_custom_call.1} parent=91 // pred_check
          %p1682 = pneg %p428
        $region94: #{tpu_custom_call.1} parent=91 // pred_check_branch
          %1684 = sbr.rel (%p1682) target = $region96
        $region95: #{tpu_custom_call.1} parent=91 // pred_region
          %s1685 = sand.u32 %s413, 1
          %s1686 = scalar_lea.sflag [#allocation4], %s1685
          %s1687 = sand.u32 %s413, 1
          %s1688 = smul.addr %s1687, 8
          %s1689 = scalar_lea.vmem [#allocation3], %s1688
          %1690 = dma.done %s1686, 128
        $region96: #{tpu_custom_call.1} parent=91 // pred_fallthru
          _
      $region92: #{tpu_custom_call.1} parent=5 // pred_fallthru
        _
    $region6: #{tpu_custom_call.1} parent=1 // loop_footer
      %s27 = sadd.s32 1, %s23
    $region7: #{tpu_custom_call.1} parent=1 // loop_footer_branch
      %22 = sbr.rel target = $region3
    $region8: #{tpu_custom_call.1} parent=1 // loop_exit
      _
    %1691 = vsyncpa [#allocation4], 1
    %s1692 = scalar_lea.sflag [#allocation4], 1
    %1693 = vsyncpa %s1692, 1

</llo_original>
